<compile_context>
chip_gen: v6e
topology: v6e:2x2x1
jax: 0.10.0
libtpu: 0.0.40
codegen_flags: <defaults>
</compile_context>

<pallas_src>
import functools

import jax
import jax.numpy as jnp
from jax import lax
from jax.experimental import pallas as pl
from jax.experimental.pallas import tpu as pltpu

BN_EPS = 1e-5
LANE = 128
SUBLANE = 8


def _round_up(x, m):
    return (x + m - 1) // m * m


def _lane_padded_bytes(shape, dtype):
    """VMEM footprint of one block (last dim padded to 128 lanes, 2nd-last to 8 sublanes)."""
    shape = (1,) * (2 - len(shape)) + tuple(shape)
    *lead, sub, lane = shape
    n = 1
    for d in lead:
        n *= d
    return n * _round_up(sub, SUBLANE) * _round_up(lane, LANE) * jnp.dtype(dtype).itemsize


def _vmem_limit_bytes(blocks):
    """Explicit scoped-VMEM budget: 2x (double-buffered pipeline) with headroom, capped."""
    est = 2 * sum(_lane_padded_bytes(s, d) for s, d in blocks)
    return int(min(max(4 * est, 8 << 20), 40 << 20))


def _conv_stats_kernel(patches_ref, w_ref, b_ref, y_ref, stats_ref, *,
                       m_valid, tile_m, mask_last_tile):
    """Per-M-tile: y = patches @ w + b (f32 accumulate); emit per-tile (sum, sumsq).

    patches_ref: (tile_m, K) mxu dtype   w_ref: (K, Cout) mxu dtype   b_ref: (1, Cout) f32
    y_ref:       (tile_m, Cout) f32      stats_ref: (2, Cout) f32  [tile dim squeezed]
    """
    y = jnp.dot(patches_ref[...], w_ref[...], preferred_element_type=jnp.float32)
    y = y + b_ref[...]
    y_ref[...] = y

    def _write_stats(v):
        stats_ref[0:1, :] = jnp.sum(v, axis=0, keepdims=True)
        stats_ref[1:2, :] = jnp.sum(v * v, axis=0, keepdims=True)

    if mask_last_tile:
        # Only the last tile can contain zero-padded M rows; mask them there only.
        i = pl.program_id(0)
        is_last = i == pl.num_programs(0) - 1

        @pl.when(jnp.logical_not(is_last))
        def _():
            _write_stats(y)

        @pl.when(is_last)
        def _():
            row = i * tile_m + lax.broadcasted_iota(jnp.int32, (tile_m, 1), 0)
            _write_stats(jnp.where(row < m_valid, y, 0.0))
    else:
        _write_stats(y)


def _bn_apply_kernel(y_ref, scale_ref, shift_ref, out_ref):
    """Per-M-tile normalize: out = y * scale + shift (scale/shift are (1, Cout))."""
    out_ref[...] = y_ref[...] * scale_ref[...] + shift_ref[...]


def conv_block_forward(x, w, b, gamma, beta, *, stride=1, padding=1,
                       tile_m=512, mxu_dtype=jnp.bfloat16):
    """x: (N, Cin, H, W); w: (Cout, Cin, KH, KW); b/gamma/beta: (Cout,) -> NCHW output."""
    N, Cin, H, W = x.shape
    Cout, _, KH, KW = w.shape
    Ho = (H + 2 * padding - KH) // stride + 1
    Wo = (W + 2 * padding - KW) // stride + 1

    M = N * Ho * Wo
    K = KH * KW * Cin
    tile_m = _round_up(max(SUBLANE, min(tile_m, _round_up(M, SUBLANE))), SUBLANE)
    Mp = _round_up(M, tile_m)
    num_tiles = Mp // tile_m
    mask_last = (Mp != M)

    # ---- JAX glue: NCHW -> NHWC, spatial pad, im2col (un-padded K, MXU dtype) ----
    x_nhwc = jnp.transpose(x, (0, 2, 3, 1)).astype(mxu_dtype)
    x_pad = jnp.pad(x_nhwc, ((0, 0), (padding, padding), (padding, padding), (0, 0)))
    cols = []
    for kh in range(KH):
        for kw in range(KW):
            cols.append(
                x_pad[:, kh:kh + stride * Ho:stride, kw:kw + stride * Wo:stride, :])
    # column ordering ((kh*KW + kw)*Cin + ci) matches the weight reshape below.
    patches = jnp.concatenate(cols, axis=-1).reshape(M, K)
    patches = jnp.pad(patches, ((0, Mp - M), (0, 0)))

    # weight (Cout, Cin, KH, KW) -> (KH, KW, Cin, Cout) -> (K, Cout)
    w2d = jnp.transpose(w, (2, 3, 1, 0)).reshape(K, Cout).astype(mxu_dtype)
    b2d = b.astype(jnp.float32).reshape(1, Cout)
    gamma_f = gamma.astype(jnp.float32)
    beta_f = beta.astype(jnp.float32)

    f32 = jnp.float32
    itemsize_in = jnp.dtype(mxu_dtype).itemsize

    # ---- Pass 1: tiled conv-matmul + bias + per-tile BN partial stats ----
    vmem1 = _vmem_limit_bytes([
        ((tile_m, K), mxu_dtype), ((K, Cout), mxu_dtype), ((1, Cout), f32),
        ((tile_m, Cout), f32), ((2, Cout), f32)])

    y2d, stats = pl.pallas_call(
        functools.partial(_conv_stats_kernel, m_valid=M, tile_m=tile_m,
                          mask_last_tile=mask_last),
        out_shape=(
            jax.ShapeDtypeStruct((Mp, Cout), f32),              # y (conv + bias), un-padded C
            jax.ShapeDtypeStruct((num_tiles, 2, Cout), f32),    # per-tile (sum, sumsq)
        ),
        grid=(num_tiles,),
        in_specs=[
            pl.BlockSpec((tile_m, K), lambda i: (i, 0)),
            pl.BlockSpec((K, Cout), lambda i: (0, 0)),
            pl.BlockSpec((1, Cout), lambda i: (0, 0)),
        ],
        out_specs=(
            pl.BlockSpec((tile_m, Cout), lambda i: (i, 0)),
            pl.BlockSpec((None, 2, Cout), lambda i: (i, 0, 0)),
        ),
        compiler_params=pltpu.CompilerParams(
            dimension_semantics=("parallel",), vmem_limit_bytes=vmem1),
        cost_estimate=pl.CostEstimate(
            flops=2 * Mp * K * Cout + 4 * Mp * Cout,
            transcendentals=0,
            bytes_accessed=(Mp * K * itemsize_in + K * Cout * itemsize_in
                            + 4 * (Cout + Mp * Cout + num_tiles * 2 * Cout))),
    )(patches, w2d, b2d)

    # ---- tiny glue: combine partial stats, fold BN into per-channel scale/shift ----
    sums = jnp.sum(stats, axis=0)                      # (2, Cout), f32
    mean = sums[0] / M
    # NOTE: E[y^2]-E[y]^2 in f32 (clamp guards tiny negatives).  Accurate at these
    # magnitudes; switch to centered/Welford combination if |mean| >> std.
    var = jnp.maximum(sums[1] / M - mean * mean, 0.0)  # biased var (training-mode BN)
    inv_std = lax.rsqrt(var + BN_EPS)
    scale = (gamma_f * inv_std).reshape(1, Cout)
    shift = (beta_f - mean * gamma_f * inv_std).reshape(1, Cout)
    # TODO(synk): PyTorch BatchNorm2d (train) also updates running_mean/running_var
    # (unbiased); this forward only normalizes with batch stats, matching the output.

    # ---- Pass 2: tiled normalize (single FMA per element), un-padded output ----
    vmem2 = _vmem_limit_bytes([
        ((tile_m, Cout), f32), ((1, Cout), f32), ((1, Cout), f32),
        ((tile_m, Cout), f32)])

    out2d = pl.pallas_call(
        _bn_apply_kernel,
        out_shape=jax.ShapeDtypeStruct((Mp, Cout), f32),
        grid=(num_tiles,),
        in_specs=[
            pl.BlockSpec((tile_m, Cout), lambda i: (i, 0)),
            pl.BlockSpec((1, Cout), lambda i: (0, 0)),
            pl.BlockSpec((1, Cout), lambda i: (0, 0)),
        ],
        out_specs=pl.BlockSpec((tile_m, Cout), lambda i: (i, 0)),
        compiler_params=pltpu.CompilerParams(
            dimension_semantics=("parallel",), vmem_limit_bytes=vmem2),
        cost_estimate=pl.CostEstimate(
            flops=2 * Mp * Cout, transcendentals=0,
            bytes_accessed=4 * (2 * Mp * Cout + 2 * Cout)),
    )(y2d, scale, shift)

    # Padded M rows of y2d/out2d hold bias-only values; they are masked from the stats
    # above and sliced away here — do not reuse them downstream.
    out = out2d[:M].reshape(N, Ho, Wo, Cout)
    return jnp.transpose(out, (0, 3, 1, 2))            # back to NCHW


def reference_forward(x, w, b, gamma, beta, *, stride=1, padding=1):
    """Pure-JAX reference: lax conv + training-mode batchnorm (NCHW)."""
    y = lax.conv_general_dilated(
        x, w, window_strides=(stride, stride),
        padding=[(padding, padding), (padding, padding)],
        dimension_numbers=("NCHW", "OIHW", "NCHW"),
    ) + b[None, :, None, None]
    mean = jnp.mean(y, axis=(0, 2, 3), keepdims=True)
    var = jnp.mean((y - mean) ** 2, axis=(0, 2, 3), keepdims=True)
    return gamma[None, :, None, None] * (y - mean) / jnp.sqrt(var + BN_EPS) \
        + beta[None, :, None, None]


if __name__ == "__main__":
    # Conv_Block(in_chan=4, out_chan=8, kernel_size=3, stride=1, padding=1)
    N, Cin, H, W = 2, 4, 16, 16
    Cout, KH, KW = 8, 3, 3

    key = jax.random.PRNGKey(0)
    kx, kw_, kb = jax.random.split(key, 3)
    x = jax.random.normal(kx, (N, Cin, H, W), dtype=jnp.float32)
    w = jax.random.normal(kw_, (Cout, Cin, KH, KW), dtype=jnp.float32) * 0.1
    b = jax.random.normal(kb, (Cout,), dtype=jnp.float32) * 0.1
    gamma = jnp.ones((Cout,), dtype=jnp.float32)   # BatchNorm2d default weight
    beta = jnp.zeros((Cout,), dtype=jnp.float32)   # BatchNorm2d default bias

    ref = reference_forward(x, w, b, gamma, beta, stride=1, padding=1)

    # f32 MXU path: tight parity check against the f32 reference.
    fwd_f32 = jax.jit(functools.partial(conv_block_forward, stride=1, padding=1,
                                        mxu_dtype=jnp.float32))
    out_f32 = jax.block_until_ready(fwd_f32(x, w, b, gamma, beta))
    assert out_f32.shape == (N, Cout, H, W)
    assert jnp.allclose(out_f32, ref, atol=1e-3, rtol=1e-3), \
        float(jnp.max(jnp.abs(out_f32 - ref)))

    # Default performance path: bf16 MXU operands, f32 accumulation / BN statistics
    # (looser tolerance reflects bf16 operand rounding vs the f32 reference conv).
    fwd = jax.jit(functools.partial(conv_block_forward, stride=1, padding=1))
    out = jax.block_until_ready(fwd(x, w, b, gamma, beta))
    assert out.shape == (N, Cout, H, W)
    assert jnp.allclose(out, ref, atol=5e-2, rtol=5e-2), \
        float(jnp.max(jnp.abs(out - ref)))

    print("KERNEL_OK")
</pallas_src>

<mosaic_0001>
module attributes {stable_mosaic.version = 11 : i64} {
  func.func @_conv_stats_kernel(%arg0: i32, %arg1: memref<512x36xf32, #tpu.memory_space<vmem>>, %arg2: memref<36x8xf32, #tpu.memory_space<vmem>>, %arg3: memref<1x8xf32, #tpu.memory_space<vmem>>, %arg4: memref<512x8xf32, #tpu.memory_space<vmem>>, %arg5: memref<1x2x8xf32, #tpu.memory_space<vmem>>) attributes {dimension_semantics = [#tpu.dimension_semantics<parallel>], iteration_bounds = array<i64: 1>, scalar_prefetch = 0 : i64, scratch_operands = 0 : i64, tpu.core_type = #tpu.core_type<tc>, window_params = [{transform_indices = @transform_0, window_bounds = array<i64: 512, 36>}, {pipeline_mode = #tpu.pipeline_mode<synchronous>, transform_indices = @transform_1, window_bounds = array<i64: 36, 8>}, {pipeline_mode = #tpu.pipeline_mode<synchronous>, transform_indices = @transform_2, window_bounds = array<i64: 1, 8>}, {transform_indices = @transform_3, window_bounds = array<i64: 512, 8>}, {transform_indices = @transform_4, window_bounds = array<i64: 1, 2, 8>}]} {
    %c0 = arith.constant 0 : index
    %c0_0 = arith.constant 0 : index
    %0 = vector.load %arg1[%c0, %c0_0] : memref<512x36xf32, #tpu.memory_space<vmem>>, vector<512x36xf32>
    %c0_1 = arith.constant 0 : index
    %c0_2 = arith.constant 0 : index
    %1 = vector.load %arg2[%c0_1, %c0_2] : memref<36x8xf32, #tpu.memory_space<vmem>>, vector<36x8xf32>
    %cst = arith.constant dense<0.000000e+00> : vector<512x8xf32>
    %2 = tpu.matmul %0, %1, %cst {dimension_numbers = #tpu.dot_dimension_numbers<[1], [0], [0], [1], [0, 0, 1, 1], [], []>} : vector<512x36xf32>, vector<36x8xf32>, vector<512x8xf32> -> vector<512x8xf32>
    %c0_3 = arith.constant 0 : index
    %c0_4 = arith.constant 0 : index
    %3 = vector.load %arg3[%c0_3, %c0_4] : memref<1x8xf32, #tpu.memory_space<vmem>>, vector<1x8xf32>
    %4 = vector.broadcast %3 : vector<1x8xf32> to vector<512x8xf32>
    %5 = arith.addf %2, %4 : vector<512x8xf32>
    %c0_5 = arith.constant 0 : index
    %c0_6 = arith.constant 0 : index
    %6 = vector.load %arg4[%c0_5, %c0_6] : memref<512x8xf32, #tpu.memory_space<vmem>>, vector<512x8xf32>
    tpu.vector_store %arg4[%c0_5, %c0_6], %5 {strides = array<i32>} : memref<512x8xf32, #tpu.memory_space<vmem>>, vector<512x8xf32>,
    %cst_7 = arith.constant dense<0.000000e+00> : vector<8xf32>
    %7 = vector.multi_reduction <add>, %5, %cst_7 [0] : vector<512x8xf32> to vector<8xf32>
    %8 = vector.shape_cast %7 : vector<8xf32> to vector<1x8xf32>
    %c0_8 = arith.constant 0 : index
    %c0_9 = arith.constant 0 : index
    %c0_10 = arith.constant 0 : index
    %9 = vector.load %arg5[%c0_8, %c0_9, %c0_10] : memref<1x2x8xf32, #tpu.memory_space<vmem>>, vector<1x1x8xf32>
    %10 = vector.shape_cast %9 : vector<1x1x8xf32> to vector<1x8xf32>
    %11 = vector.shape_cast %8 : vector<1x8xf32> to vector<1x1x8xf32>
    tpu.vector_store %arg5[%c0_8, %c0_9, %c0_10], %11 {strides = array<i32>} : memref<1x2x8xf32, #tpu.memory_space<vmem>>, vector<1x1x8xf32>,
    %12 = arith.mulf %5, %5 : vector<512x8xf32>
    %cst_11 = arith.constant dense<0.000000e+00> : vector<8xf32>
    %13 = vector.multi_reduction <add>, %12, %cst_11 [0] : vector<512x8xf32> to vector<8xf32>
    %14 = vector.shape_cast %13 : vector<8xf32> to vector<1x8xf32>
    %c0_12 = arith.constant 0 : index
    %c1 = arith.constant 1 : index
    %c0_13 = arith.constant 0 : index
    %15 = vector.load %arg5[%c0_12, %c1, %c0_13] : memref<1x2x8xf32, #tpu.memory_space<vmem>>, vector<1x1x8xf32>
    %16 = vector.shape_cast %15 : vector<1x1x8xf32> to vector<1x8xf32>
    %17 = vector.shape_cast %14 : vector<1x8xf32> to vector<1x1x8xf32>
    tpu.vector_store %arg5[%c0_12, %c1, %c0_13], %17 {strides = array<i32>} : memref<1x2x8xf32, #tpu.memory_space<vmem>>, vector<1x1x8xf32>,
    return
  }
  func.func @transform_0(%arg0: i32) -> (i32, i32) {
    %c0_i32 = arith.constant 0 : i32
    %c0_i32_0 = arith.constant 0 : i32
    return %arg0, %c0_i32 : i32, i32
  }
  func.func @transform_1(%arg0: i32) -> (i32, i32) {
    %c0_i32 = arith.constant 0 : i32
    %c0_i32_0 = arith.constant 0 : i32
    %c0_i32_1 = arith.constant 0 : i32
    return %c0_i32, %c0_i32_0 : i32, i32
  }
  func.func @transform_2(%arg0: i32) -> (i32, i32) {
    %c0_i32 = arith.constant 0 : i32
    %c0_i32_0 = arith.constant 0 : i32
    %c0_i32_1 = arith.constant 0 : i32
    return %c0_i32, %c0_i32_0 : i32, i32
  }
  func.func @transform_3(%arg0: i32) -> (i32, i32) {
    %c0_i32 = arith.constant 0 : i32
    %c0_i32_0 = arith.constant 0 : i32
    return %arg0, %c0_i32 : i32, i32
  }
  func.func @transform_4(%arg0: i32) -> (i32, i32, i32) {
    %c0_i32 = arith.constant 0 : i32
    %c0_i32_0 = arith.constant 0 : i32
    %c0_i32_1 = arith.constant 0 : i32
    return %arg0, %c0_i32, %c0_i32_0 : i32, i32, i32
  }
}

module attributes {stable_mosaic.version = 11 : i64} {
  func.func @_bn_apply_kernel(%arg0: i32, %arg1: memref<512x8xf32, #tpu.memory_space<vmem>>, %arg2: memref<1x8xf32, #tpu.memory_space<vmem>>, %arg3: memref<1x8xf32, #tpu.memory_space<vmem>>, %arg4: memref<512x8xf32, #tpu.memory_space<vmem>>) attributes {dimension_semantics = [#tpu.dimension_semantics<parallel>], iteration_bounds = array<i64: 1>, scalar_prefetch = 0 : i64, scratch_operands = 0 : i64, tpu.core_type = #tpu.core_type<tc>, window_params = [{transform_indices = @transform_0, window_bounds = array<i64: 512, 8>}, {pipeline_mode = #tpu.pipeline_mode<synchronous>, transform_indices = @transform_1, window_bounds = array<i64: 1, 8>}, {pipeline_mode = #tpu.pipeline_mode<synchronous>, transform_indices = @transform_2, window_bounds = array<i64: 1, 8>}, {transform_indices = @transform_3, window_bounds = array<i64: 512, 8>}]} {
    %c0 = arith.constant 0 : index
    %c0_0 = arith.constant 0 : index
    %0 = vector.load %arg1[%c0, %c0_0] : memref<512x8xf32, #tpu.memory_space<vmem>>, vector<512x8xf32>
    %c0_1 = arith.constant 0 : index
    %c0_2 = arith.constant 0 : index
    %1 = vector.load %arg2[%c0_1, %c0_2] : memref<1x8xf32, #tpu.memory_space<vmem>>, vector<1x8xf32>
    %2 = vector.broadcast %1 : vector<1x8xf32> to vector<512x8xf32>
    %3 = arith.mulf %0, %2 : vector<512x8xf32>
    %c0_3 = arith.constant 0 : index
    %c0_4 = arith.constant 0 : index
    %4 = vector.load %arg3[%c0_3, %c0_4] : memref<1x8xf32, #tpu.memory_space<vmem>>, vector<1x8xf32>
    %5 = vector.broadcast %4 : vector<1x8xf32> to vector<512x8xf32>
    %6 = arith.addf %3, %5 : vector<512x8xf32>
    %c0_5 = arith.constant 0 : index
    %c0_6 = arith.constant 0 : index
    %7 = vector.load %arg4[%c0_5, %c0_6] : memref<512x8xf32, #tpu.memory_space<vmem>>, vector<512x8xf32>
    tpu.vector_store %arg4[%c0_5, %c0_6], %6 {strides = array<i32>} : memref<512x8xf32, #tpu.memory_space<vmem>>, vector<512x8xf32>,
    return
  }
  func.func @transform_0(%arg0: i32) -> (i32, i32) {
    %c0_i32 = arith.constant 0 : i32
    %c0_i32_0 = arith.constant 0 : i32
    return %arg0, %c0_i32 : i32, i32
  }
  func.func @transform_1(%arg0: i32) -> (i32, i32) {
    %c0_i32 = arith.constant 0 : i32
    %c0_i32_0 = arith.constant 0 : i32
    %c0_i32_1 = arith.constant 0 : i32
    return %c0_i32, %c0_i32_0 : i32, i32
  }
  func.func @transform_2(%arg0: i32) -> (i32, i32) {
    %c0_i32 = arith.constant 0 : i32
    %c0_i32_0 = arith.constant 0 : i32
    %c0_i32_1 = arith.constant 0 : i32
    return %c0_i32, %c0_i32_0 : i32, i32
  }
  func.func @transform_3(%arg0: i32) -> (i32, i32) {
    %c0_i32 = arith.constant 0 : i32
    %c0_i32_0 = arith.constant 0 : i32
    return %arg0, %c0_i32 : i32, i32
  }
}

</mosaic_0001>

<llo_original>
// kernel: conv_block_forward.3
$region0: #{conv_block_forward.3}
  #allocation0 [shape = 'u32[]', space=smem, size = 0x4, offset = 0x4, fixed_abs, tag = 'smem constant byte address 0x4 - core index']
  #allocation1 [shape = 'u32[144,128]{1,0:T(1,128)}', space=vmem, size = 0x12000, scoped, tag = 'internal scratch']
  %s0 = inlined_call_operand.vmem [shape: f32[512,8], index: 0, kind: input, shape index: {}]
  %s1 = inlined_call_operand.vmem [shape: f32[1,8], index: 1, kind: input, shape index: {}]
  %s2 = inlined_call_operand.vmem [shape: f32[1,8], index: 2, kind: input, shape index: {}]
  %s3 = inlined_call_operand.vmem [shape: f32[512,8], index: 3, kind: output, shape index: {}]
  %s4 = sld [smem:[#allocation0]]
  $region22: #{conv_block_forward.3} parent=0
    _
  %s6 = ssub.s32 1, %s4
  %s7 = scalar_select 0, %s6, %s4
  // Predicated region
  $region2: #{conv_block_forward.3} parent=0 // pred_check
    _
  $region3: #{conv_block_forward.3} parent=0 // pred_check_branch
    %9 = sbr.rel (0) target = $region5
  $region4: #{conv_block_forward.3} parent=0 // pred_region
    _
  $region5: #{conv_block_forward.3} parent=0 // pred_fallthru
    _
  // Predicated region
  $region6: #{conv_block_forward.3} parent=0 // pred_check
    _
  $region7: #{conv_block_forward.3} parent=0 // pred_check_branch
    %11 = sbr.rel (0) target = $region9
  $region8: #{conv_block_forward.3} parent=0 // pred_region
    _
  $region9: #{conv_block_forward.3} parent=0 // pred_fallthru
    _
  // Predicated region
  $region10: #{conv_block_forward.3} parent=0 // pred_check
    _
  $region11: #{conv_block_forward.3} parent=0 // pred_check_branch
    %13 = sbr.rel (0) target = $region13
  $region12: #{conv_block_forward.3} parent=0 // pred_region
    _
  $region13: #{conv_block_forward.3} parent=0 // pred_fallthru
    _
  %v14 = vld [vmem:[%s0] sm:$0xff]
  %v15 = vld [vmem:[%s0 + $0x8] sm:$0xff]
  %v16 = vld [vmem:[%s0 + $0x10] sm:$0xff]
  %v17 = vld [vmem:[%s0 + $0x18] sm:$0xff]
  %v18 = vld [vmem:[%s0 + $0x20] sm:$0xff]
  %v19 = vld [vmem:[%s0 + $0x28] sm:$0xff]
  %v20 = vld [vmem:[%s0 + $0x30] sm:$0xff]
  %v21 = vld [vmem:[%s0 + $0x38] sm:$0xff]
  %v22 = vld [vmem:[%s0 + $0x40] sm:$0xff]
  %v23 = vld [vmem:[%s0 + $0x48] sm:$0xff]
  %v24 = vld [vmem:[%s0 + $0x50] sm:$0xff]
  %v25 = vld [vmem:[%s0 + $0x58] sm:$0xff]
  %v26 = vld [vmem:[%s0 + $0x60] sm:$0xff]
  %v27 = vld [vmem:[%s0 + $0x68] sm:$0xff]
  %v28 = vld [vmem:[%s0 + $0x70] sm:$0xff]
  %v29 = vld [vmem:[%s0 + $0x78] sm:$0xff]
  %v30 = vld [vmem:[%s0 + $0x80] sm:$0xff]
  %v31 = vld [vmem:[%s0 + $0x88] sm:$0xff]
  %v32 = vld [vmem:[%s0 + $0x90] sm:$0xff]
  %v33 = vld [vmem:[%s0 + $0x98] sm:$0xff]
  %v34 = vld [vmem:[%s0 + $0xa0] sm:$0xff]
  %v35 = vld [vmem:[%s0 + $0xa8] sm:$0xff]
  %v36 = vld [vmem:[%s0 + $0xb0] sm:$0xff]
  %v37 = vld [vmem:[%s0 + $0xb8] sm:$0xff]
  %v38 = vld [vmem:[%s0 + $0xc0] sm:$0xff]
  %v39 = vld [vmem:[%s0 + $0xc8] sm:$0xff]
  %v40 = vld [vmem:[%s0 + $0xd0] sm:$0xff]
  %v41 = vld [vmem:[%s0 + $0xd8] sm:$0xff]
  %v42 = vld [vmem:[%s0 + $0xe0] sm:$0xff]
  %v43 = vld [vmem:[%s0 + $0xe8] sm:$0xff]
  %v44 = vld [vmem:[%s0 + $0xf0] sm:$0xff]
  %v45 = vld [vmem:[%s0 + $0xf8] sm:$0xff]
  %v46 = vld [vmem:[%s0 + $0x100] sm:$0xff]
  %v47 = vld [vmem:[%s0 + $0x108] sm:$0xff]
  %v48 = vld [vmem:[%s0 + $0x110] sm:$0xff]
  %v49 = vld [vmem:[%s0 + $0x118] sm:$0xff]
  %v50 = vld [vmem:[%s0 + $0x120] sm:$0xff]
  %v51 = vld [vmem:[%s0 + $0x128] sm:$0xff]
  %v52 = vld [vmem:[%s0 + $0x130] sm:$0xff]
  %v53 = vld [vmem:[%s0 + $0x138] sm:$0xff]
  %v54 = vld [vmem:[%s0 + $0x140] sm:$0xff]
  %v55 = vld [vmem:[%s0 + $0x148] sm:$0xff]
  %v56 = vld [vmem:[%s0 + $0x150] sm:$0xff]
  %v57 = vld [vmem:[%s0 + $0x158] sm:$0xff]
  %v58 = vld [vmem:[%s0 + $0x160] sm:$0xff]
  %v59 = vld [vmem:[%s0 + $0x168] sm:$0xff]
  %v60 = vld [vmem:[%s0 + $0x170] sm:$0xff]
  %v61 = vld [vmem:[%s0 + $0x178] sm:$0xff]
  %v62 = vld [vmem:[%s0 + $0x180] sm:$0xff]
  %v63 = vld [vmem:[%s0 + $0x188] sm:$0xff]
  %v64 = vld [vmem:[%s0 + $0x190] sm:$0xff]
  %v65 = vld [vmem:[%s0 + $0x198] sm:$0xff]
  %v66 = vld [vmem:[%s0 + $0x1a0] sm:$0xff]
  %v67 = vld [vmem:[%s0 + $0x1a8] sm:$0xff]
  %v68 = vld [vmem:[%s0 + $0x1b0] sm:$0xff]
  %v69 = vld [vmem:[%s0 + $0x1b8] sm:$0xff]
  %v70 = vld [vmem:[%s0 + $0x1c0] sm:$0xff]
  %v71 = vld [vmem:[%s0 + $0x1c8] sm:$0xff]
  %v72 = vld [vmem:[%s0 + $0x1d0] sm:$0xff]
  %v73 = vld [vmem:[%s0 + $0x1d8] sm:$0xff]
  %v74 = vld [vmem:[%s0 + $0x1e0] sm:$0xff]
  %v75 = vld [vmem:[%s0 + $0x1e8] sm:$0xff]
  %v76 = vld [vmem:[%s0 + $0x1f0] sm:$0xff]
  %v77 = vld [vmem:[%s0 + $0x1f8] sm:$0xff]
  %v78 = vld [vmem:[%s1] sm:$0x1]
  %v80 = vlaneseq
  %v81 = vshrl.u32 %v80, 7
  %v82 = vsub.s32 0, %v81
  %v83 = vrot.slane %v78, %v82
  %v85 = vmul.f32 %v14, %v83
  %v86 = vmul.f32 %v15, %v83
  %v87 = vmul.f32 %v16, %v83
  %v88 = vmul.f32 %v17, %v83
  %v89 = vmul.f32 %v18, %v83
  %v90 = vmul.f32 %v19, %v83
  %v91 = vmul.f32 %v20, %v83
  %v92 = vmul.f32 %v21, %v83
  %v93 = vmul.f32 %v22, %v83
  %v94 = vmul.f32 %v23, %v83
  %v95 = vmul.f32 %v24, %v83
  %v96 = vmul.f32 %v25, %v83
  %v97 = vmul.f32 %v26, %v83
  %v98 = vmul.f32 %v27, %v83
  %v99 = vmul.f32 %v28, %v83
  %v100 = vmul.f32 %v29, %v83
  %v101 = vmul.f32 %v30, %v83
  %v102 = vmul.f32 %v31, %v83
  %v103 = vmul.f32 %v32, %v83
  %v104 = vmul.f32 %v33, %v83
  %v105 = vmul.f32 %v34, %v83
  %v106 = vmul.f32 %v35, %v83
  %v107 = vmul.f32 %v36, %v83
  %v108 = vmul.f32 %v37, %v83
  %v109 = vmul.f32 %v38, %v83
  %v110 = vmul.f32 %v39, %v83
  %v111 = vmul.f32 %v40, %v83
  %v112 = vmul.f32 %v41, %v83
  %v113 = vmul.f32 %v42, %v83
  %v114 = vmul.f32 %v43, %v83
  %v115 = vmul.f32 %v44, %v83
  %v116 = vmul.f32 %v45, %v83
  %v117 = vmul.f32 %v46, %v83
  %v118 = vmul.f32 %v47, %v83
  %v119 = vmul.f32 %v48, %v83
  %v120 = vmul.f32 %v49, %v83
  %v121 = vmul.f32 %v50, %v83
  %v122 = vmul.f32 %v51, %v83
  %v123 = vmul.f32 %v52, %v83
  %v124 = vmul.f32 %v53, %v83
  %v125 = vmul.f32 %v54, %v83
  %v126 = vmul.f32 %v55, %v83
  %v127 = vmul.f32 %v56, %v83
  %v128 = vmul.f32 %v57, %v83
  %v129 = vmul.f32 %v58, %v83
  %v130 = vmul.f32 %v59, %v83
  %v131 = vmul.f32 %v60, %v83
  %v132 = vmul.f32 %v61, %v83
  %v133 = vmul.f32 %v62, %v83
  %v134 = vmul.f32 %v63, %v83
  %v135 = vmul.f32 %v64, %v83
  %v136 = vmul.f32 %v65, %v83
  %v137 = vmul.f32 %v66, %v83
  %v138 = vmul.f32 %v67, %v83
  %v139 = vmul.f32 %v68, %v83
  %v140 = vmul.f32 %v69, %v83
  %v141 = vmul.f32 %v70, %v83
  %v142 = vmul.f32 %v71, %v83
  %v143 = vmul.f32 %v72, %v83
  %v144 = vmul.f32 %v73, %v83
  %v145 = vmul.f32 %v74, %v83
  %v146 = vmul.f32 %v75, %v83
  %v147 = vmul.f32 %v76, %v83
  %v148 = vmul.f32 %v77, %v83
  %v149 = vld [vmem:[%s2] sm:$0x1]
  %v151 = vlaneseq
  %v152 = vshrl.u32 %v151, 7
  %v153 = vsub.s32 0, %v152
  %v154 = vrot.slane %v149, %v153
  %v156 = vadd.f32 %v85, %v154
  %v157 = vadd.f32 %v86, %v154
  %v158 = vadd.f32 %v87, %v154
  %v159 = vadd.f32 %v88, %v154
  %v160 = vadd.f32 %v89, %v154
  %v161 = vadd.f32 %v90, %v154
  %v162 = vadd.f32 %v91, %v154
  %v163 = vadd.f32 %v92, %v154
  %v164 = vadd.f32 %v93, %v154
  %v165 = vadd.f32 %v94, %v154
  %v166 = vadd.f32 %v95, %v154
  %v167 = vadd.f32 %v96, %v154
  %v168 = vadd.f32 %v97, %v154
  %v169 = vadd.f32 %v98, %v154
  %v170 = vadd.f32 %v99, %v154
  %v171 = vadd.f32 %v100, %v154
  %v172 = vadd.f32 %v101, %v154
  %v173 = vadd.f32 %v102, %v154
  %v174 = vadd.f32 %v103, %v154
  %v175 = vadd.f32 %v104, %v154
  %v176 = vadd.f32 %v105, %v154
  %v177 = vadd.f32 %v106, %v154
  %v178 = vadd.f32 %v107, %v154
  %v179 = vadd.f32 %v108, %v154
  %v180 = vadd.f32 %v109, %v154
  %v181 = vadd.f32 %v110, %v154
  %v182 = vadd.f32 %v111, %v154
  %v183 = vadd.f32 %v112, %v154
  %v184 = vadd.f32 %v113, %v154
  %v185 = vadd.f32 %v114, %v154
  %v186 = vadd.f32 %v115, %v154
  %v187 = vadd.f32 %v116, %v154
  %v188 = vadd.f32 %v117, %v154
  %v189 = vadd.f32 %v118, %v154
  %v190 = vadd.f32 %v119, %v154
  %v191 = vadd.f32 %v120, %v154
  %v192 = vadd.f32 %v121, %v154
  %v193 = vadd.f32 %v122, %v154
  %v194 = vadd.f32 %v123, %v154
  %v195 = vadd.f32 %v124, %v154
  %v196 = vadd.f32 %v125, %v154
  %v197 = vadd.f32 %v126, %v154
  %v198 = vadd.f32 %v127, %v154
  %v199 = vadd.f32 %v128, %v154
  %v200 = vadd.f32 %v129, %v154
  %v201 = vadd.f32 %v130, %v154
  %v202 = vadd.f32 %v131, %v154
  %v203 = vadd.f32 %v132, %v154
  %v204 = vadd.f32 %v133, %v154
  %v205 = vadd.f32 %v134, %v154
  %v206 = vadd.f32 %v135, %v154
  %v207 = vadd.f32 %v136, %v154
  %v208 = vadd.f32 %v137, %v154
  %v209 = vadd.f32 %v138, %v154
  %v210 = vadd.f32 %v139, %v154
  %v211 = vadd.f32 %v140, %v154
  %v212 = vadd.f32 %v141, %v154
  %v213 = vadd.f32 %v142, %v154
  %v214 = vadd.f32 %v143, %v154
  %v215 = vadd.f32 %v144, %v154
  %v216 = vadd.f32 %v145, %v154
  %v217 = vadd.f32 %v146, %v154
  %v218 = vadd.f32 %v147, %v154
  %v219 = vadd.f32 %v148, %v154
  %vm220 = vcmask 64512
  %221 = vst.msk [vmem:[%s3] sm:$0xff] %vm220, %v156
  %222 = vst.msk [vmem:[%s3 + $0x8] sm:$0xff] %vm220, %v157
  %223 = vst.msk [vmem:[%s3 + $0x10] sm:$0xff] %vm220, %v158
  %224 = vst.msk [vmem:[%s3 + $0x18] sm:$0xff] %vm220, %v159
  %225 = vst.msk [vmem:[%s3 + $0x20] sm:$0xff] %vm220, %v160
  %226 = vst.msk [vmem:[%s3 + $0x28] sm:$0xff] %vm220, %v161
  %227 = vst.msk [vmem:[%s3 + $0x30] sm:$0xff] %vm220, %v162
  %228 = vst.msk [vmem:[%s3 + $0x38] sm:$0xff] %vm220, %v163
  %229 = vst.msk [vmem:[%s3 + $0x40] sm:$0xff] %vm220, %v164
  %230 = vst.msk [vmem:[%s3 + $0x48] sm:$0xff] %vm220, %v165
  %231 = vst.msk [vmem:[%s3 + $0x50] sm:$0xff] %vm220, %v166
  %232 = vst.msk [vmem:[%s3 + $0x58] sm:$0xff] %vm220, %v167
  %233 = vst.msk [vmem:[%s3 + $0x60] sm:$0xff] %vm220, %v168
  %234 = vst.msk [vmem:[%s3 + $0x68] sm:$0xff] %vm220, %v169
  %235 = vst.msk [vmem:[%s3 + $0x70] sm:$0xff] %vm220, %v170
  %236 = vst.msk [vmem:[%s3 + $0x78] sm:$0xff] %vm220, %v171
  %237 = vst.msk [vmem:[%s3 + $0x80] sm:$0xff] %vm220, %v172
  %238 = vst.msk [vmem:[%s3 + $0x88] sm:$0xff] %vm220, %v173
  %239 = vst.msk [vmem:[%s3 + $0x90] sm:$0xff] %vm220, %v174
  %240 = vst.msk [vmem:[%s3 + $0x98] sm:$0xff] %vm220, %v175
  %241 = vst.msk [vmem:[%s3 + $0xa0] sm:$0xff] %vm220, %v176
  %242 = vst.msk [vmem:[%s3 + $0xa8] sm:$0xff] %vm220, %v177
  %243 = vst.msk [vmem:[%s3 + $0xb0] sm:$0xff] %vm220, %v178
  %244 = vst.msk [vmem:[%s3 + $0xb8] sm:$0xff] %vm220, %v179
  %245 = vst.msk [vmem:[%s3 + $0xc0] sm:$0xff] %vm220, %v180
  %246 = vst.msk [vmem:[%s3 + $0xc8] sm:$0xff] %vm220, %v181
  %247 = vst.msk [vmem:[%s3 + $0xd0] sm:$0xff] %vm220, %v182
  %248 = vst.msk [vmem:[%s3 + $0xd8] sm:$0xff] %vm220, %v183
  %249 = vst.msk [vmem:[%s3 + $0xe0] sm:$0xff] %vm220, %v184
  %250 = vst.msk [vmem:[%s3 + $0xe8] sm:$0xff] %vm220, %v185
  %251 = vst.msk [vmem:[%s3 + $0xf0] sm:$0xff] %vm220, %v186
  %252 = vst.msk [vmem:[%s3 + $0xf8] sm:$0xff] %vm220, %v187
  %253 = vst.msk [vmem:[%s3 + $0x100] sm:$0xff] %vm220, %v188
  %254 = vst.msk [vmem:[%s3 + $0x108] sm:$0xff] %vm220, %v189
  %255 = vst.msk [vmem:[%s3 + $0x110] sm:$0xff] %vm220, %v190
  %256 = vst.msk [vmem:[%s3 + $0x118] sm:$0xff] %vm220, %v191
  %257 = vst.msk [vmem:[%s3 + $0x120] sm:$0xff] %vm220, %v192
  %258 = vst.msk [vmem:[%s3 + $0x128] sm:$0xff] %vm220, %v193
  %259 = vst.msk [vmem:[%s3 + $0x130] sm:$0xff] %vm220, %v194
  %260 = vst.msk [vmem:[%s3 + $0x138] sm:$0xff] %vm220, %v195
  %261 = vst.msk [vmem:[%s3 + $0x140] sm:$0xff] %vm220, %v196
  %262 = vst.msk [vmem:[%s3 + $0x148] sm:$0xff] %vm220, %v197
  %263 = vst.msk [vmem:[%s3 + $0x150] sm:$0xff] %vm220, %v198
  %264 = vst.msk [vmem:[%s3 + $0x158] sm:$0xff] %vm220, %v199
  %265 = vst.msk [vmem:[%s3 + $0x160] sm:$0xff] %vm220, %v200
  %266 = vst.msk [vmem:[%s3 + $0x168] sm:$0xff] %vm220, %v201
  %267 = vst.msk [vmem:[%s3 + $0x170] sm:$0xff] %vm220, %v202
  %268 = vst.msk [vmem:[%s3 + $0x178] sm:$0xff] %vm220, %v203
  %269 = vst.msk [vmem:[%s3 + $0x180] sm:$0xff] %vm220, %v204
  %270 = vst.msk [vmem:[%s3 + $0x188] sm:$0xff] %vm220, %v205
  %271 = vst.msk [vmem:[%s3 + $0x190] sm:$0xff] %vm220, %v206
  %272 = vst.msk [vmem:[%s3 + $0x198] sm:$0xff] %vm220, %v207
  %273 = vst.msk [vmem:[%s3 + $0x1a0] sm:$0xff] %vm220, %v208
  %274 = vst.msk [vmem:[%s3 + $0x1a8] sm:$0xff] %vm220, %v209
  %275 = vst.msk [vmem:[%s3 + $0x1b0] sm:$0xff] %vm220, %v210
  %276 = vst.msk [vmem:[%s3 + $0x1b8] sm:$0xff] %vm220, %v211
  %277 = vst.msk [vmem:[%s3 + $0x1c0] sm:$0xff] %vm220, %v212
  %278 = vst.msk [vmem:[%s3 + $0x1c8] sm:$0xff] %vm220, %v213
  %279 = vst.msk [vmem:[%s3 + $0x1d0] sm:$0xff] %vm220, %v214
  %280 = vst.msk [vmem:[%s3 + $0x1d8] sm:$0xff] %vm220, %v215
  %281 = vst.msk [vmem:[%s3 + $0x1e0] sm:$0xff] %vm220, %v216
  %282 = vst.msk [vmem:[%s3 + $0x1e8] sm:$0xff] %vm220, %v217
  %283 = vst.msk [vmem:[%s3 + $0x1f0] sm:$0xff] %vm220, %v218
  %284 = vst.msk [vmem:[%s3 + $0x1f8] sm:$0xff] %vm220, %v219
  // Predicated region
  $region14: #{conv_block_forward.3} parent=0 // pred_check
    _
  $region15: #{conv_block_forward.3} parent=0 // pred_check_branch
    %286 = sbr.rel (0) target = $region17
  $region16: #{conv_block_forward.3} parent=0 // pred_region
    _
  $region17: #{conv_block_forward.3} parent=0 // pred_fallthru
    _
  // Predicated region
  $region18: #{conv_block_forward.3} parent=0 // pred_check
    _
  $region19: #{conv_block_forward.3} parent=0 // pred_check_branch
    %288 = sbr.rel (0) target = $region21
  $region20: #{conv_block_forward.3} parent=0 // pred_region
    _
  $region21: #{conv_block_forward.3} parent=0 // pred_fallthru
    _

// kernel: conv_block_forward.2
$region0: #{conv_block_forward.2}
  #allocation0 [shape = 'u32[]', space=smem, size = 0x4, offset = 0x4, fixed_abs, tag = 'smem constant byte address 0x4 - core index']
  #allocation1 [shape = 'u32[144,128]{1,0:T(1,128)}', space=vmem, size = 0x12000, scoped, tag = 'internal scratch']
  %s0 = inlined_call_operand.vmem [shape: f32[512,36], index: 0, kind: input, shape index: {}]
  %s1 = inlined_call_operand.vmem [shape: f32[36,8], index: 1, kind: input, shape index: {}]
  %s2 = inlined_call_operand.vmem [shape: f32[1,8], index: 2, kind: input, shape index: {}]
  %s3 = inlined_call_operand.vmem [shape: f32[512,8], index: 3, kind: output, shape index: {0}]
  %s4 = inlined_call_operand.vmem [shape: f32[1,2,8], index: 4, kind: output, shape index: {1}]
  %5 = xla_tuple %s3, %s4
  %s6 = sld [smem:[#allocation0]]
  $region30: #{conv_block_forward.2} parent=0
    _
  %s8 = ssub.s32 1, %s6
  %s9 = scalar_select 0, %s8, %s6
  // Predicated region
  $region2: #{conv_block_forward.2} parent=0 // pred_check
    _
  $region3: #{conv_block_forward.2} parent=0 // pred_check_branch
    %11 = sbr.rel (0) target = $region5
  $region4: #{conv_block_forward.2} parent=0 // pred_region
    _
  $region5: #{conv_block_forward.2} parent=0 // pred_fallthru
    _
  // Predicated region
  $region6: #{conv_block_forward.2} parent=0 // pred_check
    _
  $region7: #{conv_block_forward.2} parent=0 // pred_check_branch
    %13 = sbr.rel (0) target = $region9
  $region8: #{conv_block_forward.2} parent=0 // pred_region
    _
  $region9: #{conv_block_forward.2} parent=0 // pred_fallthru
    _
  // Predicated region
  $region10: #{conv_block_forward.2} parent=0 // pred_check
    _
  $region11: #{conv_block_forward.2} parent=0 // pred_check_branch
    %15 = sbr.rel (0) target = $region13
  $region12: #{conv_block_forward.2} parent=0 // pred_region
    _
  $region13: #{conv_block_forward.2} parent=0 // pred_fallthru
    _
  %v16 = vld [vmem:[%s0] sm:$0xff]
  %v17 = vld [vmem:[%s0 + $0x8] sm:$0xff]
  %v18 = vld [vmem:[%s0 + $0x10] sm:$0xff]
  %v19 = vld [vmem:[%s0 + $0x18] sm:$0xff]
  %v20 = vld [vmem:[%s0 + $0x20] sm:$0xff]
  %v21 = vld [vmem:[%s0 + $0x28] sm:$0xff]
  %v22 = vld [vmem:[%s0 + $0x30] sm:$0xff]
  %v23 = vld [vmem:[%s0 + $0x38] sm:$0xff]
  %v24 = vld [vmem:[%s0 + $0x40] sm:$0xff]
  %v25 = vld [vmem:[%s0 + $0x48] sm:$0xff]
  %v26 = vld [vmem:[%s0 + $0x50] sm:$0xff]
  %v27 = vld [vmem:[%s0 + $0x58] sm:$0xff]
  %v28 = vld [vmem:[%s0 + $0x60] sm:$0xff]
  %v29 = vld [vmem:[%s0 + $0x68] sm:$0xff]
  %v30 = vld [vmem:[%s0 + $0x70] sm:$0xff]
  %v31 = vld [vmem:[%s0 + $0x78] sm:$0xff]
  %v32 = vld [vmem:[%s0 + $0x80] sm:$0xff]
  %v33 = vld [vmem:[%s0 + $0x88] sm:$0xff]
  %v34 = vld [vmem:[%s0 + $0x90] sm:$0xff]
  %v35 = vld [vmem:[%s0 + $0x98] sm:$0xff]
  %v36 = vld [vmem:[%s0 + $0xa0] sm:$0xff]
  %v37 = vld [vmem:[%s0 + $0xa8] sm:$0xff]
  %v38 = vld [vmem:[%s0 + $0xb0] sm:$0xff]
  %v39 = vld [vmem:[%s0 + $0xb8] sm:$0xff]
  %v40 = vld [vmem:[%s0 + $0xc0] sm:$0xff]
  %v41 = vld [vmem:[%s0 + $0xc8] sm:$0xff]
  %v42 = vld [vmem:[%s0 + $0xd0] sm:$0xff]
  %v43 = vld [vmem:[%s0 + $0xd8] sm:$0xff]
  %v44 = vld [vmem:[%s0 + $0xe0] sm:$0xff]
  %v45 = vld [vmem:[%s0 + $0xe8] sm:$0xff]
  %v46 = vld [vmem:[%s0 + $0xf0] sm:$0xff]
  %v47 = vld [vmem:[%s0 + $0xf8] sm:$0xff]
  %v48 = vld [vmem:[%s0 + $0x100] sm:$0xff]
  %v49 = vld [vmem:[%s0 + $0x108] sm:$0xff]
  %v50 = vld [vmem:[%s0 + $0x110] sm:$0xff]
  %v51 = vld [vmem:[%s0 + $0x118] sm:$0xff]
  %v52 = vld [vmem:[%s0 + $0x120] sm:$0xff]
  %v53 = vld [vmem:[%s0 + $0x128] sm:$0xff]
  %v54 = vld [vmem:[%s0 + $0x130] sm:$0xff]
  %v55 = vld [vmem:[%s0 + $0x138] sm:$0xff]
  %v56 = vld [vmem:[%s0 + $0x140] sm:$0xff]
  %v57 = vld [vmem:[%s0 + $0x148] sm:$0xff]
  %v58 = vld [vmem:[%s0 + $0x150] sm:$0xff]
  %v59 = vld [vmem:[%s0 + $0x158] sm:$0xff]
  %v60 = vld [vmem:[%s0 + $0x160] sm:$0xff]
  %v61 = vld [vmem:[%s0 + $0x168] sm:$0xff]
  %v62 = vld [vmem:[%s0 + $0x170] sm:$0xff]
  %v63 = vld [vmem:[%s0 + $0x178] sm:$0xff]
  %v64 = vld [vmem:[%s0 + $0x180] sm:$0xff]
  %v65 = vld [vmem:[%s0 + $0x188] sm:$0xff]
  %v66 = vld [vmem:[%s0 + $0x190] sm:$0xff]
  %v67 = vld [vmem:[%s0 + $0x198] sm:$0xff]
  %v68 = vld [vmem:[%s0 + $0x1a0] sm:$0xff]
  %v69 = vld [vmem:[%s0 + $0x1a8] sm:$0xff]
  %v70 = vld [vmem:[%s0 + $0x1b0] sm:$0xff]
  %v71 = vld [vmem:[%s0 + $0x1b8] sm:$0xff]
  %v72 = vld [vmem:[%s0 + $0x1c0] sm:$0xff]
  %v73 = vld [vmem:[%s0 + $0x1c8] sm:$0xff]
  %v74 = vld [vmem:[%s0 + $0x1d0] sm:$0xff]
  %v75 = vld [vmem:[%s0 + $0x1d8] sm:$0xff]
  %v76 = vld [vmem:[%s0 + $0x1e0] sm:$0xff]
  %v77 = vld [vmem:[%s0 + $0x1e8] sm:$0xff]
  %v78 = vld [vmem:[%s0 + $0x1f0] sm:$0xff]
  %v79 = vld [vmem:[%s0 + $0x1f8] sm:$0xff]
  %v80 = vld [vmem:[%s1] sm:$0xff]
  %v81 = vld [vmem:[%s1 + $0x8] sm:$0xff]
  %v82 = vld [vmem:[%s1 + $0x10] sm:$0xff]
  %v83 = vld [vmem:[%s1 + $0x18] sm:$0xff]
  %v84 = vld [vmem:[%s1 + $0x20] sm:$0xf]
  %v85 = vld [vmem:[%s2] sm:$0x1]
  %v87 = vlaneseq
  %v88 = vshrl.u32 %v87, 7
  %v89 = vsub.s32 0, %v88
  %v90 = vrot.slane %v85, %v89
  %vm92 = vcmask 293888
  %v94 = vsel %vm92, %v16, 0
  %v97 = vsel %vm92, %v17, 0
  %v100 = vsel %vm92, %v18, 0
  %v103 = vsel %vm92, %v19, 0
  %v106 = vsel %vm92, %v20, 0
  %v109 = vsel %vm92, %v21, 0
  %v112 = vsel %vm92, %v22, 0
  %v115 = vsel %vm92, %v23, 0
  %v118 = vsel %vm92, %v24, 0
  %v121 = vsel %vm92, %v25, 0
  %v124 = vsel %vm92, %v26, 0
  %v127 = vsel %vm92, %v27, 0
  %v130 = vsel %vm92, %v28, 0
  %v133 = vsel %vm92, %v29, 0
  %v136 = vsel %vm92, %v30, 0
  %v139 = vsel %vm92, %v31, 0
  %v142 = vsel %vm92, %v32, 0
  %v145 = vsel %vm92, %v33, 0
  %v148 = vsel %vm92, %v34, 0
  %v151 = vsel %vm92, %v35, 0
  %v154 = vsel %vm92, %v36, 0
  %v157 = vsel %vm92, %v37, 0
  %v160 = vsel %vm92, %v38, 0
  %v163 = vsel %vm92, %v39, 0
  %v166 = vsel %vm92, %v40, 0
  %v169 = vsel %vm92, %v41, 0
  %v172 = vsel %vm92, %v42, 0
  %v175 = vsel %vm92, %v43, 0
  %v178 = vsel %vm92, %v44, 0
  %v181 = vsel %vm92, %v45, 0
  %v184 = vsel %vm92, %v46, 0
  %v187 = vsel %vm92, %v47, 0
  %v190 = vsel %vm92, %v48, 0
  %v193 = vsel %vm92, %v49, 0
  %v196 = vsel %vm92, %v50, 0
  %v199 = vsel %vm92, %v51, 0
  %v202 = vsel %vm92, %v52, 0
  %v205 = vsel %vm92, %v53, 0
  %v208 = vsel %vm92, %v54, 0
  %v211 = vsel %vm92, %v55, 0
  %v214 = vsel %vm92, %v56, 0
  %v217 = vsel %vm92, %v57, 0
  %v220 = vsel %vm92, %v58, 0
  %v223 = vsel %vm92, %v59, 0
  %v226 = vsel %vm92, %v60, 0
  %v229 = vsel %vm92, %v61, 0
  %v232 = vsel %vm92, %v62, 0
  %v235 = vsel %vm92, %v63, 0
  %v238 = vsel %vm92, %v64, 0
  %v241 = vsel %vm92, %v65, 0
  %v244 = vsel %vm92, %v66, 0
  %v247 = vsel %vm92, %v67, 0
  %v250 = vsel %vm92, %v68, 0
  %v253 = vsel %vm92, %v69, 0
  %v256 = vsel %vm92, %v70, 0
  %v259 = vsel %vm92, %v71, 0
  %v262 = vsel %vm92, %v72, 0
  %v265 = vsel %vm92, %v73, 0
  %v268 = vsel %vm92, %v74, 0
  %v271 = vsel %vm92, %v75, 0
  %v274 = vsel %vm92, %v76, 0
  %v277 = vsel %vm92, %v77, 0
  %v280 = vsel %vm92, %v78, 0
  %v283 = vsel %vm92, %v79, 0
  %vm285 = vcmask 1043456
  %v287 = vsel %vm285, %v84, 0
  %289 = vmatprep.subr.mxu0 0.0
  %290 = vmatpush1.msra.mxu0 0.0
  %291 = vmatprep.subr.mxu0 0.0
  %292 = vmatpush1.msra.mxu0 0.0
  %293 = vmatprep.subr.mxu0 0.0
  %294 = vmatpush1.msra.mxu0 0.0
  %295 = vmatprep.subr.mxu0 0.0
  %296 = vmatpush1.msra.mxu0 0.0
  %297 = vmatprep.subr.mxu0 0.0
  %298 = vmatpush1.msra.mxu0 0.0
  %299 = vmatprep.subr.mxu0 0.0
  %300 = vmatpush1.msra.mxu0 0.0
  %301 = vmatprep.subr.mxu0 0.0
  %302 = vmatpush1.msra.mxu0 0.0
  %303 = vmatprep.subr.mxu0 0.0
  %304 = vmatpush1.msra.mxu0 0.0
  %305 = vmatprep.subr.mxu0 0.0
  %306 = vmatpush1.msra.mxu0 0.0
  %307 = vmatprep.subr.mxu0 0.0
  %308 = vmatpush1.msra.mxu0 0.0
  %309 = vmatprep.subr.mxu0 0.0
  %310 = vmatpush1.msra.mxu0 0.0
  %311 = vmatprep.subr.mxu0 0.0
  %312 = vmatpush1.msra.mxu0 %v287
  %313 = vmatprep.subr.mxu0 0.0
  %314 = vmatpush1.msra.mxu0 %v83
  %315 = vmatprep.subr.mxu0 0.0
  %316 = vmatpush1.msra.mxu0 %v82
  %317 = vmatprep.subr.mxu0 0.0
  %318 = vmatpush1.msra.mxu0 %v81
  %319 = vmatprep.subr.mxu0 0.0
  %320 = vmatpush1.msra.mxu0 %v80
  %321 = vmatprep.subr.mxu0 0.0
  %322 = vmatpush2.msra.mxu0 0.0
  %323 = vmatprep.subr.mxu0 0.0
  %324 = vmatpush2.msra.mxu0 0.0
  %325 = vmatprep.subr.mxu0 0.0
  %326 = vmatpush2.msra.mxu0 0.0
  %327 = vmatprep.subr.mxu0 0.0
  %328 = vmatpush2.msra.mxu0 0.0
  %329 = vmatprep.subr.mxu0 0.0
  %330 = vmatpush2.msra.mxu0 0.0
  %331 = vmatprep.subr.mxu0 0.0
  %332 = vmatpush2.msra.mxu0 0.0
  %333 = vmatprep.subr.mxu0 0.0
  %334 = vmatpush2.msra.mxu0 0.0
  %335 = vmatprep.subr.mxu0 0.0
  %336 = vmatpush2.msra.mxu0 0.0
  %337 = vmatprep.subr.mxu0 0.0
  %338 = vmatpush2.msra.mxu0 0.0
  %339 = vmatprep.subr.mxu0 0.0
  %340 = vmatpush2.msra.mxu0 0.0
  %341 = vmatprep.subr.mxu0 0.0
  %342 = vmatpush2.msra.mxu0 0.0
  %343 = vmatprep.subr.mxu0 0.0
  %344 = vmatpush2.msra.mxu0 0.0
  %345 = vmatprep.subr.mxu0 0.0
  %346 = vmatpush2.msra.mxu0 0.0
  %347 = vmatprep.subr.mxu0 0.0
  %348 = vmatpush2.msra.mxu0 0.0
  %349 = vmatprep.subr.mxu0 0.0
  %350 = vmatpush2.msra.mxu0 0.0
  %351 = vmatprep.subr.mxu0 0.0
  %352 = vmatpush2.msra.mxu0 0.0
  %353 = vmatprep.mubr.f32.mxu0 0.0
  %354 = vmatmul.mubr.f32.gmra.mxu0 %v94
  %v355 = vpop.f32.mrf.mxu0
  %v356 = vadd.f32 %v90, %v355
  %v357 = vpop.f32.mrf.mxu0
  %358 = vmatprep.mubr.f32.mxu0 0.0
  %359 = vmatmul.mubr.f32.gmra.mxu0 %v97
  %v360 = vpop.f32.mrf.mxu0
  %v361 = vadd.f32 %v90, %v360
  %v362 = vpop.f32.mrf.mxu0
  %363 = vmatprep.mubr.f32.mxu0 0.0
  %364 = vmatmul.mubr.f32.gmra.mxu0 %v100
  %v365 = vpop.f32.mrf.mxu0
  %v366 = vadd.f32 %v90, %v365
  %v367 = vpop.f32.mrf.mxu0
  %368 = vmatprep.mubr.f32.mxu0 0.0
  %369 = vmatmul.mubr.f32.gmra.mxu0 %v103
  %v370 = vpop.f32.mrf.mxu0
  %v371 = vadd.f32 %v90, %v370
  %v372 = vpop.f32.mrf.mxu0
  %373 = vmatprep.mubr.f32.mxu0 0.0
  %374 = vmatmul.mubr.f32.gmra.mxu0 %v106
  %v375 = vpop.f32.mrf.mxu0
  %v376 = vadd.f32 %v90, %v375
  %v377 = vpop.f32.mrf.mxu0
  %378 = vmatprep.mubr.f32.mxu0 0.0
  %379 = vmatmul.mubr.f32.gmra.mxu0 %v109
  %v380 = vpop.f32.mrf.mxu0
  %v381 = vadd.f32 %v90, %v380
  %v382 = vpop.f32.mrf.mxu0
  %383 = vmatprep.mubr.f32.mxu0 0.0
  %384 = vmatmul.mubr.f32.gmra.mxu0 %v112
  %v385 = vpop.f32.mrf.mxu0
  %v386 = vadd.f32 %v90, %v385
  %v387 = vpop.f32.mrf.mxu0
  %388 = vmatprep.mubr.f32.mxu0 0.0
  %389 = vmatmul.mubr.f32.gmra.mxu0 %v115
  %v390 = vpop.f32.mrf.mxu0
  %v391 = vadd.f32 %v90, %v390
  %v392 = vpop.f32.mrf.mxu0
  %393 = vmatprep.mubr.f32.mxu0 0.0
  %394 = vmatmul.mubr.f32.gmra.mxu0 %v118
  %v395 = vpop.f32.mrf.mxu0
  %v396 = vadd.f32 %v90, %v395
  %v397 = vpop.f32.mrf.mxu0
  %398 = vmatprep.mubr.f32.mxu0 0.0
  %399 = vmatmul.mubr.f32.gmra.mxu0 %v121
  %v400 = vpop.f32.mrf.mxu0
  %v401 = vadd.f32 %v90, %v400
  %v402 = vpop.f32.mrf.mxu0
  %403 = vmatprep.mubr.f32.mxu0 0.0
  %404 = vmatmul.mubr.f32.gmra.mxu0 %v124
  %v405 = vpop.f32.mrf.mxu0
  %v406 = vadd.f32 %v90, %v405
  %v407 = vpop.f32.mrf.mxu0
  %408 = vmatprep.mubr.f32.mxu0 0.0
  %409 = vmatmul.mubr.f32.gmra.mxu0 %v127
  %v410 = vpop.f32.mrf.mxu0
  %v411 = vadd.f32 %v90, %v410
  %v412 = vpop.f32.mrf.mxu0
  %413 = vmatprep.mubr.f32.mxu0 0.0
  %414 = vmatmul.mubr.f32.gmra.mxu0 %v130
  %v415 = vpop.f32.mrf.mxu0
  %v416 = vadd.f32 %v90, %v415
  %v417 = vpop.f32.mrf.mxu0
  %418 = vmatprep.mubr.f32.mxu0 0.0
  %419 = vmatmul.mubr.f32.gmra.mxu0 %v133
  %v420 = vpop.f32.mrf.mxu0
  %v421 = vadd.f32 %v90, %v420
  %v422 = vpop.f32.mrf.mxu0
  %423 = vmatprep.mubr.f32.mxu0 0.0
  %424 = vmatmul.mubr.f32.gmra.mxu0 %v136
  %v425 = vpop.f32.mrf.mxu0
  %v426 = vadd.f32 %v90, %v425
  %v427 = vpop.f32.mrf.mxu0
  %428 = vmatprep.mubr.f32.mxu0 0.0
  %429 = vmatmul.mubr.f32.gmra.mxu0 %v139
  %v430 = vpop.f32.mrf.mxu0
  %v431 = vadd.f32 %v90, %v430
  %v432 = vpop.f32.mrf.mxu0
  %433 = vmatprep.mubr.f32.mxu0 0.0
  %434 = vmatmul.mubr.f32.gmra.mxu0 %v142
  %v435 = vpop.f32.mrf.mxu0
  %v436 = vadd.f32 %v90, %v435
  %v437 = vpop.f32.mrf.mxu0
  %438 = vmatprep.mubr.f32.mxu0 0.0
  %439 = vmatmul.mubr.f32.gmra.mxu0 %v145
  %v440 = vpop.f32.mrf.mxu0
  %v441 = vadd.f32 %v90, %v440
  %v442 = vpop.f32.mrf.mxu0
  %443 = vmatprep.mubr.f32.mxu0 0.0
  %444 = vmatmul.mubr.f32.gmra.mxu0 %v148
  %v445 = vpop.f32.mrf.mxu0
  %v446 = vadd.f32 %v90, %v445
  %v447 = vpop.f32.mrf.mxu0
  %448 = vmatprep.mubr.f32.mxu0 0.0
  %449 = vmatmul.mubr.f32.gmra.mxu0 %v151
  %v450 = vpop.f32.mrf.mxu0
  %v451 = vadd.f32 %v90, %v450
  %v452 = vpop.f32.mrf.mxu0
  %453 = vmatprep.mubr.f32.mxu0 0.0
  %454 = vmatmul.mubr.f32.gmra.mxu0 %v154
  %v455 = vpop.f32.mrf.mxu0
  %v456 = vadd.f32 %v90, %v455
  %v457 = vpop.f32.mrf.mxu0
  %458 = vmatprep.mubr.f32.mxu0 0.0
  %459 = vmatmul.mubr.f32.gmra.mxu0 %v157
  %v460 = vpop.f32.mrf.mxu0
  %v461 = vadd.f32 %v90, %v460
  %v462 = vpop.f32.mrf.mxu0
  %463 = vmatprep.mubr.f32.mxu0 0.0
  %464 = vmatmul.mubr.f32.gmra.mxu0 %v160
  %v465 = vpop.f32.mrf.mxu0
  %v466 = vadd.f32 %v90, %v465
  %v467 = vpop.f32.mrf.mxu0
  %468 = vmatprep.mubr.f32.mxu0 0.0
  %469 = vmatmul.mubr.f32.gmra.mxu0 %v163
  %v470 = vpop.f32.mrf.mxu0
  %v471 = vadd.f32 %v90, %v470
  %v472 = vpop.f32.mrf.mxu0
  %473 = vmatprep.mubr.f32.mxu0 0.0
  %474 = vmatmul.mubr.f32.gmra.mxu0 %v166
  %v475 = vpop.f32.mrf.mxu0
  %v476 = vadd.f32 %v90, %v475
  %v477 = vpop.f32.mrf.mxu0
  %478 = vmatprep.mubr.f32.mxu0 0.0
  %479 = vmatmul.mubr.f32.gmra.mxu0 %v169
  %v480 = vpop.f32.mrf.mxu0
  %v481 = vadd.f32 %v90, %v480
  %v482 = vpop.f32.mrf.mxu0
  %483 = vmatprep.mubr.f32.mxu0 0.0
  %484 = vmatmul.mubr.f32.gmra.mxu0 %v172
  %v485 = vpop.f32.mrf.mxu0
  %v486 = vadd.f32 %v90, %v485
  %v487 = vpop.f32.mrf.mxu0
  %488 = vmatprep.mubr.f32.mxu0 0.0
  %489 = vmatmul.mubr.f32.gmra.mxu0 %v175
  %v490 = vpop.f32.mrf.mxu0
  %v491 = vadd.f32 %v90, %v490
  %v492 = vpop.f32.mrf.mxu0
  %493 = vmatprep.mubr.f32.mxu0 0.0
  %494 = vmatmul.mubr.f32.gmra.mxu0 %v178
  %v495 = vpop.f32.mrf.mxu0
  %v496 = vadd.f32 %v90, %v495
  %v497 = vpop.f32.mrf.mxu0
  %498 = vmatprep.mubr.f32.mxu0 0.0
  %499 = vmatmul.mubr.f32.gmra.mxu0 %v181
  %v500 = vpop.f32.mrf.mxu0
  %v501 = vadd.f32 %v90, %v500
  %v502 = vpop.f32.mrf.mxu0
  %503 = vmatprep.mubr.f32.mxu0 0.0
  %504 = vmatmul.mubr.f32.gmra.mxu0 %v184
  %v505 = vpop.f32.mrf.mxu0
  %v506 = vadd.f32 %v90, %v505
  %v507 = vpop.f32.mrf.mxu0
  %508 = vmatprep.mubr.f32.mxu0 0.0
  %509 = vmatmul.mubr.f32.gmra.mxu0 %v187
  %v510 = vpop.f32.mrf.mxu0
  %v511 = vadd.f32 %v90, %v510
  %v512 = vpop.f32.mrf.mxu0
  %513 = vmatprep.mubr.f32.mxu0 0.0
  %514 = vmatmul.mubr.f32.gmra.mxu0 %v190
  %v515 = vpop.f32.mrf.mxu0
  %v516 = vadd.f32 %v90, %v515
  %v517 = vpop.f32.mrf.mxu0
  %518 = vmatprep.mubr.f32.mxu0 0.0
  %519 = vmatmul.mubr.f32.gmra.mxu0 %v193
  %v520 = vpop.f32.mrf.mxu0
  %v521 = vadd.f32 %v90, %v520
  %v522 = vpop.f32.mrf.mxu0
  %523 = vmatprep.mubr.f32.mxu0 0.0
  %524 = vmatmul.mubr.f32.gmra.mxu0 %v196
  %v525 = vpop.f32.mrf.mxu0
  %v526 = vadd.f32 %v90, %v525
  %v527 = vpop.f32.mrf.mxu0
  %528 = vmatprep.mubr.f32.mxu0 0.0
  %529 = vmatmul.mubr.f32.gmra.mxu0 %v199
  %v530 = vpop.f32.mrf.mxu0
  %v531 = vadd.f32 %v90, %v530
  %v532 = vpop.f32.mrf.mxu0
  %533 = vmatprep.mubr.f32.mxu0 0.0
  %534 = vmatmul.mubr.f32.gmra.mxu0 %v202
  %v535 = vpop.f32.mrf.mxu0
  %v536 = vadd.f32 %v90, %v535
  %v537 = vpop.f32.mrf.mxu0
  %538 = vmatprep.mubr.f32.mxu0 0.0
  %539 = vmatmul.mubr.f32.gmra.mxu0 %v205
  %v540 = vpop.f32.mrf.mxu0
  %v541 = vadd.f32 %v90, %v540
  %v542 = vpop.f32.mrf.mxu0
  %543 = vmatprep.mubr.f32.mxu0 0.0
  %544 = vmatmul.mubr.f32.gmra.mxu0 %v208
  %v545 = vpop.f32.mrf.mxu0
  %v546 = vadd.f32 %v90, %v545
  %v547 = vpop.f32.mrf.mxu0
  %548 = vmatprep.mubr.f32.mxu0 0.0
  %549 = vmatmul.mubr.f32.gmra.mxu0 %v211
  %v550 = vpop.f32.mrf.mxu0
  %v551 = vadd.f32 %v90, %v550
  %v552 = vpop.f32.mrf.mxu0
  %553 = vmatprep.mubr.f32.mxu0 0.0
  %554 = vmatmul.mubr.f32.gmra.mxu0 %v214
  %v555 = vpop.f32.mrf.mxu0
  %v556 = vadd.f32 %v90, %v555
  %v557 = vpop.f32.mrf.mxu0
  %558 = vmatprep.mubr.f32.mxu0 0.0
  %559 = vmatmul.mubr.f32.gmra.mxu0 %v217
  %v560 = vpop.f32.mrf.mxu0
  %v561 = vadd.f32 %v90, %v560
  %v562 = vpop.f32.mrf.mxu0
  %563 = vmatprep.mubr.f32.mxu0 0.0
  %564 = vmatmul.mubr.f32.gmra.mxu0 %v220
  %v565 = vpop.f32.mrf.mxu0
  %v566 = vadd.f32 %v90, %v565
  %v567 = vpop.f32.mrf.mxu0
  %568 = vmatprep.mubr.f32.mxu0 0.0
  %569 = vmatmul.mubr.f32.gmra.mxu0 %v223
  %v570 = vpop.f32.mrf.mxu0
  %v571 = vadd.f32 %v90, %v570
  %v572 = vpop.f32.mrf.mxu0
  %573 = vmatprep.mubr.f32.mxu0 0.0
  %574 = vmatmul.mubr.f32.gmra.mxu0 %v226
  %v575 = vpop.f32.mrf.mxu0
  %v576 = vadd.f32 %v90, %v575
  %v577 = vpop.f32.mrf.mxu0
  %578 = vmatprep.mubr.f32.mxu0 0.0
  %579 = vmatmul.mubr.f32.gmra.mxu0 %v229
  %v580 = vpop.f32.mrf.mxu0
  %v581 = vadd.f32 %v90, %v580
  %v582 = vpop.f32.mrf.mxu0
  %583 = vmatprep.mubr.f32.mxu0 0.0
  %584 = vmatmul.mubr.f32.gmra.mxu0 %v232
  %v585 = vpop.f32.mrf.mxu0
  %v586 = vadd.f32 %v90, %v585
  %v587 = vpop.f32.mrf.mxu0
  %588 = vmatprep.mubr.f32.mxu0 0.0
  %589 = vmatmul.mubr.f32.gmra.mxu0 %v235
  %v590 = vpop.f32.mrf.mxu0
  %v591 = vadd.f32 %v90, %v590
  %v592 = vpop.f32.mrf.mxu0
  %593 = vmatprep.mubr.f32.mxu0 0.0
  %594 = vmatmul.mubr.f32.gmra.mxu0 %v238
  %v595 = vpop.f32.mrf.mxu0
  %v596 = vadd.f32 %v90, %v595
  %v597 = vpop.f32.mrf.mxu0
  %598 = vmatprep.mubr.f32.mxu0 0.0
  %599 = vmatmul.mubr.f32.gmra.mxu0 %v241
  %v600 = vpop.f32.mrf.mxu0
  %v601 = vadd.f32 %v90, %v600
  %v602 = vpop.f32.mrf.mxu0
  %603 = vmatprep.mubr.f32.mxu0 0.0
  %604 = vmatmul.mubr.f32.gmra.mxu0 %v244
  %v605 = vpop.f32.mrf.mxu0
  %v606 = vadd.f32 %v90, %v605
  %v607 = vpop.f32.mrf.mxu0
  %608 = vmatprep.mubr.f32.mxu0 0.0
  %609 = vmatmul.mubr.f32.gmra.mxu0 %v247
  %v610 = vpop.f32.mrf.mxu0
  %v611 = vadd.f32 %v90, %v610
  %v612 = vpop.f32.mrf.mxu0
  %613 = vmatprep.mubr.f32.mxu0 0.0
  %614 = vmatmul.mubr.f32.gmra.mxu0 %v250
  %v615 = vpop.f32.mrf.mxu0
  %v616 = vadd.f32 %v90, %v615
  %v617 = vpop.f32.mrf.mxu0
  %618 = vmatprep.mubr.f32.mxu0 0.0
  %619 = vmatmul.mubr.f32.gmra.mxu0 %v253
  %v620 = vpop.f32.mrf.mxu0
  %v621 = vadd.f32 %v90, %v620
  %v622 = vpop.f32.mrf.mxu0
  %623 = vmatprep.mubr.f32.mxu0 0.0
  %624 = vmatmul.mubr.f32.gmra.mxu0 %v256
  %v625 = vpop.f32.mrf.mxu0
  %v626 = vadd.f32 %v90, %v625
  %v627 = vpop.f32.mrf.mxu0
  %628 = vmatprep.mubr.f32.mxu0 0.0
  %629 = vmatmul.mubr.f32.gmra.mxu0 %v259
  %v630 = vpop.f32.mrf.mxu0
  %v631 = vadd.f32 %v90, %v630
  %v632 = vpop.f32.mrf.mxu0
  %633 = vmatprep.mubr.f32.mxu0 0.0
  %634 = vmatmul.mubr.f32.gmra.mxu0 %v262
  %v635 = vpop.f32.mrf.mxu0
  %v636 = vadd.f32 %v90, %v635
  %v637 = vpop.f32.mrf.mxu0
  %638 = vmatprep.mubr.f32.mxu0 0.0
  %639 = vmatmul.mubr.f32.gmra.mxu0 %v265
  %v640 = vpop.f32.mrf.mxu0
  %v641 = vadd.f32 %v90, %v640
  %v642 = vpop.f32.mrf.mxu0
  %643 = vmatprep.mubr.f32.mxu0 0.0
  %644 = vmatmul.mubr.f32.gmra.mxu0 %v268
  %v645 = vpop.f32.mrf.mxu0
  %v646 = vadd.f32 %v90, %v645
  %v647 = vpop.f32.mrf.mxu0
  %648 = vmatprep.mubr.f32.mxu0 0.0
  %649 = vmatmul.mubr.f32.gmra.mxu0 %v271
  %v650 = vpop.f32.mrf.mxu0
  %v651 = vadd.f32 %v90, %v650
  %v652 = vpop.f32.mrf.mxu0
  %653 = vmatprep.mubr.f32.mxu0 0.0
  %654 = vmatmul.mubr.f32.gmra.mxu0 %v274
  %v655 = vpop.f32.mrf.mxu0
  %v656 = vadd.f32 %v90, %v655
  %v657 = vpop.f32.mrf.mxu0
  %658 = vmatprep.mubr.f32.mxu0 0.0
  %659 = vmatmul.mubr.f32.gmra.mxu0 %v277
  %v660 = vpop.f32.mrf.mxu0
  %v661 = vadd.f32 %v90, %v660
  %v662 = vpop.f32.mrf.mxu0
  %663 = vmatprep.mubr.f32.mxu0 0.0
  %664 = vmatmul.mubr.f32.gmra.mxu0 %v280
  %v665 = vpop.f32.mrf.mxu0
  %v666 = vadd.f32 %v90, %v665
  %v667 = vpop.f32.mrf.mxu0
  %668 = vmatprep.mubr.f32.mxu0 0.0
  %669 = vmatmul.mubr.f32.gmra.mxu0 %v283
  %v670 = vpop.f32.mrf.mxu0
  %v671 = vadd.f32 %v90, %v670
  %v672 = vpop.f32.mrf.mxu0
  %673 = vdwg.mxu0
  %vm674 = vcmask 64512
  %675 = vst.msk [vmem:[%s3] sm:$0xff] %vm674, %v356
  %676 = vst.msk [vmem:[%s3 + $0x8] sm:$0xff] %vm674, %v361
  %677 = vst.msk [vmem:[%s3 + $0x10] sm:$0xff] %vm674, %v366
  %678 = vst.msk [vmem:[%s3 + $0x18] sm:$0xff] %vm674, %v371
  %679 = vst.msk [vmem:[%s3 + $0x20] sm:$0xff] %vm674, %v376
  %680 = vst.msk [vmem:[%s3 + $0x28] sm:$0xff] %vm674, %v381
  %681 = vst.msk [vmem:[%s3 + $0x30] sm:$0xff] %vm674, %v386
  %682 = vst.msk [vmem:[%s3 + $0x38] sm:$0xff] %vm674, %v391
  %683 = vst.msk [vmem:[%s3 + $0x40] sm:$0xff] %vm674, %v396
  %684 = vst.msk [vmem:[%s3 + $0x48] sm:$0xff] %vm674, %v401
  %685 = vst.msk [vmem:[%s3 + $0x50] sm:$0xff] %vm674, %v406
  %686 = vst.msk [vmem:[%s3 + $0x58] sm:$0xff] %vm674, %v411
  %687 = vst.msk [vmem:[%s3 + $0x60] sm:$0xff] %vm674, %v416
  %688 = vst.msk [vmem:[%s3 + $0x68] sm:$0xff] %vm674, %v421
  %689 = vst.msk [vmem:[%s3 + $0x70] sm:$0xff] %vm674, %v426
  %690 = vst.msk [vmem:[%s3 + $0x78] sm:$0xff] %vm674, %v431
  %691 = vst.msk [vmem:[%s3 + $0x80] sm:$0xff] %vm674, %v436
  %692 = vst.msk [vmem:[%s3 + $0x88] sm:$0xff] %vm674, %v441
  %693 = vst.msk [vmem:[%s3 + $0x90] sm:$0xff] %vm674, %v446
  %694 = vst.msk [vmem:[%s3 + $0x98] sm:$0xff] %vm674, %v451
  %695 = vst.msk [vmem:[%s3 + $0xa0] sm:$0xff] %vm674, %v456
  %696 = vst.msk [vmem:[%s3 + $0xa8] sm:$0xff] %vm674, %v461
  %697 = vst.msk [vmem:[%s3 + $0xb0] sm:$0xff] %vm674, %v466
  %698 = vst.msk [vmem:[%s3 + $0xb8] sm:$0xff] %vm674, %v471
  %699 = vst.msk [vmem:[%s3 + $0xc0] sm:$0xff] %vm674, %v476
  %700 = vst.msk [vmem:[%s3 + $0xc8] sm:$0xff] %vm674, %v481
  %701 = vst.msk [vmem:[%s3 + $0xd0] sm:$0xff] %vm674, %v486
  %702 = vst.msk [vmem:[%s3 + $0xd8] sm:$0xff] %vm674, %v491
  %703 = vst.msk [vmem:[%s3 + $0xe0] sm:$0xff] %vm674, %v496
  %704 = vst.msk [vmem:[%s3 + $0xe8] sm:$0xff] %vm674, %v501
  %705 = vst.msk [vmem:[%s3 + $0xf0] sm:$0xff] %vm674, %v506
  %706 = vst.msk [vmem:[%s3 + $0xf8] sm:$0xff] %vm674, %v511
  %707 = vst.msk [vmem:[%s3 + $0x100] sm:$0xff] %vm674, %v516
  %708 = vst.msk [vmem:[%s3 + $0x108] sm:$0xff] %vm674, %v521
  %709 = vst.msk [vmem:[%s3 + $0x110] sm:$0xff] %vm674, %v526
  %710 = vst.msk [vmem:[%s3 + $0x118] sm:$0xff] %vm674, %v531
  %711 = vst.msk [vmem:[%s3 + $0x120] sm:$0xff] %vm674, %v536
  %712 = vst.msk [vmem:[%s3 + $0x128] sm:$0xff] %vm674, %v541
  %713 = vst.msk [vmem:[%s3 + $0x130] sm:$0xff] %vm674, %v546
  %714 = vst.msk [vmem:[%s3 + $0x138] sm:$0xff] %vm674, %v551
  %715 = vst.msk [vmem:[%s3 + $0x140] sm:$0xff] %vm674, %v556
  %716 = vst.msk [vmem:[%s3 + $0x148] sm:$0xff] %vm674, %v561
  %717 = vst.msk [vmem:[%s3 + $0x150] sm:$0xff] %vm674, %v566
  %718 = vst.msk [vmem:[%s3 + $0x158] sm:$0xff] %vm674, %v571
  %719 = vst.msk [vmem:[%s3 + $0x160] sm:$0xff] %vm674, %v576
  %720 = vst.msk [vmem:[%s3 + $0x168] sm:$0xff] %vm674, %v581
  %721 = vst.msk [vmem:[%s3 + $0x170] sm:$0xff] %vm674, %v586
  %722 = vst.msk [vmem:[%s3 + $0x178] sm:$0xff] %vm674, %v591
  %723 = vst.msk [vmem:[%s3 + $0x180] sm:$0xff] %vm674, %v596
  %724 = vst.msk [vmem:[%s3 + $0x188] sm:$0xff] %vm674, %v601
  %725 = vst.msk [vmem:[%s3 + $0x190] sm:$0xff] %vm674, %v606
  %726 = vst.msk [vmem:[%s3 + $0x198] sm:$0xff] %vm674, %v611
  %727 = vst.msk [vmem:[%s3 + $0x1a0] sm:$0xff] %vm674, %v616
  %728 = vst.msk [vmem:[%s3 + $0x1a8] sm:$0xff] %vm674, %v621
  %729 = vst.msk [vmem:[%s3 + $0x1b0] sm:$0xff] %vm674, %v626
  %730 = vst.msk [vmem:[%s3 + $0x1b8] sm:$0xff] %vm674, %v631
  %731 = vst.msk [vmem:[%s3 + $0x1c0] sm:$0xff] %vm674, %v636
  %732 = vst.msk [vmem:[%s3 + $0x1c8] sm:$0xff] %vm674, %v641
  %733 = vst.msk [vmem:[%s3 + $0x1d0] sm:$0xff] %vm674, %v646
  %734 = vst.msk [vmem:[%s3 + $0x1d8] sm:$0xff] %vm674, %v651
  %735 = vst.msk [vmem:[%s3 + $0x1e0] sm:$0xff] %vm674, %v656
  %736 = vst.msk [vmem:[%s3 + $0x1e8] sm:$0xff] %vm674, %v661
  %737 = vst.msk [vmem:[%s3 + $0x1f0] sm:$0xff] %vm674, %v666
  %738 = vst.msk [vmem:[%s3 + $0x1f8] sm:$0xff] %vm674, %v671
  %v739 = vsel %vm674, %v356, 0.0
  %v740 = vsel %vm674, %v361, 0.0
  %v741 = vadd.f32 %v739, %v740
  %v742 = vsel %vm674, %v366, 0.0
  %v743 = vadd.f32 %v741, %v742
  %v744 = vsel %vm674, %v371, 0.0
  %v745 = vadd.f32 %v743, %v744
  %v746 = vsel %vm674, %v376, 0.0
  %v747 = vadd.f32 %v745, %v746
  %v748 = vsel %vm674, %v381, 0.0
  %v749 = vadd.f32 %v747, %v748
  %v750 = vsel %vm674, %v386, 0.0
  %v751 = vadd.f32 %v749, %v750
  %v752 = vsel %vm674, %v391, 0.0
  %v753 = vadd.f32 %v751, %v752
  %v754 = vsel %vm674, %v396, 0.0
  %v755 = vadd.f32 %v753, %v754
  %v756 = vsel %vm674, %v401, 0.0
  %v757 = vadd.f32 %v755, %v756
  %v758 = vsel %vm674, %v406, 0.0
  %v759 = vadd.f32 %v757, %v758
  %v760 = vsel %vm674, %v411, 0.0
  %v761 = vadd.f32 %v759, %v760
  %v762 = vsel %vm674, %v416, 0.0
  %v763 = vadd.f32 %v761, %v762
  %v764 = vsel %vm674, %v421, 0.0
  %v765 = vadd.f32 %v763, %v764
  %v766 = vsel %vm674, %v426, 0.0
  %v767 = vadd.f32 %v765, %v766
  %v768 = vsel %vm674, %v431, 0.0
  %v769 = vadd.f32 %v767, %v768
  %v770 = vsel %vm674, %v436, 0.0
  %v771 = vadd.f32 %v769, %v770
  %v772 = vsel %vm674, %v441, 0.0
  %v773 = vadd.f32 %v771, %v772
  %v774 = vsel %vm674, %v446, 0.0
  %v775 = vadd.f32 %v773, %v774
  %v776 = vsel %vm674, %v451, 0.0
  %v777 = vadd.f32 %v775, %v776
  %v778 = vsel %vm674, %v456, 0.0
  %v779 = vadd.f32 %v777, %v778
  %v780 = vsel %vm674, %v461, 0.0
  %v781 = vadd.f32 %v779, %v780
  %v782 = vsel %vm674, %v466, 0.0
  %v783 = vadd.f32 %v781, %v782
  %v784 = vsel %vm674, %v471, 0.0
  %v785 = vadd.f32 %v783, %v784
  %v786 = vsel %vm674, %v476, 0.0
  %v787 = vadd.f32 %v785, %v786
  %v788 = vsel %vm674, %v481, 0.0
  %v789 = vadd.f32 %v787, %v788
  %v790 = vsel %vm674, %v486, 0.0
  %v791 = vadd.f32 %v789, %v790
  %v792 = vsel %vm674, %v491, 0.0
  %v793 = vadd.f32 %v791, %v792
  %v794 = vsel %vm674, %v496, 0.0
  %v795 = vadd.f32 %v793, %v794
  %v796 = vsel %vm674, %v501, 0.0
  %v797 = vadd.f32 %v795, %v796
  %v798 = vsel %vm674, %v506, 0.0
  %v799 = vadd.f32 %v797, %v798
  %v800 = vsel %vm674, %v511, 0.0
  %v801 = vadd.f32 %v799, %v800
  %v802 = vsel %vm674, %v516, 0.0
  %v803 = vadd.f32 %v801, %v802
  %v804 = vsel %vm674, %v521, 0.0
  %v805 = vadd.f32 %v803, %v804
  %v806 = vsel %vm674, %v526, 0.0
  %v807 = vadd.f32 %v805, %v806
  %v808 = vsel %vm674, %v531, 0.0
  %v809 = vadd.f32 %v807, %v808
  %v810 = vsel %vm674, %v536, 0.0
  %v811 = vadd.f32 %v809, %v810
  %v812 = vsel %vm674, %v541, 0.0
  %v813 = vadd.f32 %v811, %v812
  %v814 = vsel %vm674, %v546, 0.0
  %v815 = vadd.f32 %v813, %v814
  %v816 = vsel %vm674, %v551, 0.0
  %v817 = vadd.f32 %v815, %v816
  %v818 = vsel %vm674, %v556, 0.0
  %v819 = vadd.f32 %v817, %v818
  %v820 = vsel %vm674, %v561, 0.0
  %v821 = vadd.f32 %v819, %v820
  %v822 = vsel %vm674, %v566, 0.0
  %v823 = vadd.f32 %v821, %v822
  %v824 = vsel %vm674, %v571, 0.0
  %v825 = vadd.f32 %v823, %v824
  %v826 = vsel %vm674, %v576, 0.0
  %v827 = vadd.f32 %v825, %v826
  %v828 = vsel %vm674, %v581, 0.0
  %v829 = vadd.f32 %v827, %v828
  %v830 = vsel %vm674, %v586, 0.0
  %v831 = vadd.f32 %v829, %v830
  %v832 = vsel %vm674, %v591, 0.0
  %v833 = vadd.f32 %v831, %v832
  %v834 = vsel %vm674, %v596, 0.0
  %v835 = vadd.f32 %v833, %v834
  %v836 = vsel %vm674, %v601, 0.0
  %v837 = vadd.f32 %v835, %v836
  %v838 = vsel %vm674, %v606, 0.0
  %v839 = vadd.f32 %v837, %v838
  %v840 = vsel %vm674, %v611, 0.0
  %v841 = vadd.f32 %v839, %v840
  %v842 = vsel %vm674, %v616, 0.0
  %v843 = vadd.f32 %v841, %v842
  %v844 = vsel %vm674, %v621, 0.0
  %v845 = vadd.f32 %v843, %v844
  %v846 = vsel %vm674, %v626, 0.0
  %v847 = vadd.f32 %v845, %v846
  %v848 = vsel %vm674, %v631, 0.0
  %v849 = vadd.f32 %v847, %v848
  %v850 = vsel %vm674, %v636, 0.0
  %v851 = vadd.f32 %v849, %v850
  %v852 = vsel %vm674, %v641, 0.0
  %v853 = vadd.f32 %v851, %v852
  %v854 = vsel %vm674, %v646, 0.0
  %v855 = vadd.f32 %v853, %v854
  %v856 = vsel %vm674, %v651, 0.0
  %v857 = vadd.f32 %v855, %v856
  %v858 = vsel %vm674, %v656, 0.0
  %v859 = vadd.f32 %v857, %v858
  %v860 = vsel %vm674, %v661, 0.0
  %v861 = vadd.f32 %v859, %v860
  %v862 = vsel %vm674, %v666, 0.0
  %v863 = vadd.f32 %v861, %v862
  %v864 = vsel %vm674, %v671, 0.0
  %v865 = vadd.f32 %v863, %v864
  %v866 = vrot.slane %v865, 4
  %v867 = vadd.f32 %v865, %v866
  %v868 = vrot.slane %v867, 2
  %v869 = vadd.f32 %v867, %v868
  %v870 = vrot.slane %v869, 1
  %v871 = vadd.f32 %v869, %v870
  %vm872 = vcmask 57344
  %873 = vst.msk [vmem:[%s4] sm:$0x1] %vm872, %v871
  %v874 = vmul.f32 %v356, %v356
  %v875 = vmul.f32 %v361, %v361
  %v876 = vmul.f32 %v366, %v366
  %v877 = vmul.f32 %v371, %v371
  %v878 = vmul.f32 %v376, %v376
  %v879 = vmul.f32 %v381, %v381
  %v880 = vmul.f32 %v386, %v386
  %v881 = vmul.f32 %v391, %v391
  %v882 = vmul.f32 %v396, %v396
  %v883 = vmul.f32 %v401, %v401
  %v884 = vmul.f32 %v406, %v406
  %v885 = vmul.f32 %v411, %v411
  %v886 = vmul.f32 %v416, %v416
  %v887 = vmul.f32 %v421, %v421
  %v888 = vmul.f32 %v426, %v426
  %v889 = vmul.f32 %v431, %v431
  %v890 = vmul.f32 %v436, %v436
  %v891 = vmul.f32 %v441, %v441
  %v892 = vmul.f32 %v446, %v446
  %v893 = vmul.f32 %v451, %v451
  %v894 = vmul.f32 %v456, %v456
  %v895 = vmul.f32 %v461, %v461
  %v896 = vmul.f32 %v466, %v466
  %v897 = vmul.f32 %v471, %v471
  %v898 = vmul.f32 %v476, %v476
  %v899 = vmul.f32 %v481, %v481
  %v900 = vmul.f32 %v486, %v486
  %v901 = vmul.f32 %v491, %v491
  %v902 = vmul.f32 %v496, %v496
  %v903 = vmul.f32 %v501, %v501
  %v904 = vmul.f32 %v506, %v506
  %v905 = vmul.f32 %v511, %v511
  %v906 = vmul.f32 %v516, %v516
  %v907 = vmul.f32 %v521, %v521
  %v908 = vmul.f32 %v526, %v526
  %v909 = vmul.f32 %v531, %v531
  %v910 = vmul.f32 %v536, %v536
  %v911 = vmul.f32 %v541, %v541
  %v912 = vmul.f32 %v546, %v546
  %v913 = vmul.f32 %v551, %v551
  %v914 = vmul.f32 %v556, %v556
  %v915 = vmul.f32 %v561, %v561
  %v916 = vmul.f32 %v566, %v566
  %v917 = vmul.f32 %v571, %v571
  %v918 = vmul.f32 %v576, %v576
  %v919 = vmul.f32 %v581, %v581
  %v920 = vmul.f32 %v586, %v586
  %v921 = vmul.f32 %v591, %v591
  %v922 = vmul.f32 %v596, %v596
  %v923 = vmul.f32 %v601, %v601
  %v924 = vmul.f32 %v606, %v606
  %v925 = vmul.f32 %v611, %v611
  %v926 = vmul.f32 %v616, %v616
  %v927 = vmul.f32 %v621, %v621
  %v928 = vmul.f32 %v626, %v626
  %v929 = vmul.f32 %v631, %v631
  %v930 = vmul.f32 %v636, %v636
  %v931 = vmul.f32 %v641, %v641
  %v932 = vmul.f32 %v646, %v646
  %v933 = vmul.f32 %v651, %v651
  %v934 = vmul.f32 %v656, %v656
  %v935 = vmul.f32 %v661, %v661
  %v936 = vmul.f32 %v666, %v666
  %v937 = vmul.f32 %v671, %v671
  %v938 = vsel %vm674, %v874, 0.0
  %v939 = vsel %vm674, %v875, 0.0
  %v940 = vadd.f32 %v938, %v939
  %v941 = vsel %vm674, %v876, 0.0
  %v942 = vadd.f32 %v940, %v941
  %v943 = vsel %vm674, %v877, 0.0
  %v944 = vadd.f32 %v942, %v943
  %v945 = vsel %vm674, %v878, 0.0
  %v946 = vadd.f32 %v944, %v945
  %v947 = vsel %vm674, %v879, 0.0
  %v948 = vadd.f32 %v946, %v947
  %v949 = vsel %vm674, %v880, 0.0
  %v950 = vadd.f32 %v948, %v949
  %v951 = vsel %vm674, %v881, 0.0
  %v952 = vadd.f32 %v950, %v951
  %v953 = vsel %vm674, %v882, 0.0
  %v954 = vadd.f32 %v952, %v953
  %v955 = vsel %vm674, %v883, 0.0
  %v956 = vadd.f32 %v954, %v955
  %v957 = vsel %vm674, %v884, 0.0
  %v958 = vadd.f32 %v956, %v957
  %v959 = vsel %vm674, %v885, 0.0
  %v960 = vadd.f32 %v958, %v959
  %v961 = vsel %vm674, %v886, 0.0
  %v962 = vadd.f32 %v960, %v961
  %v963 = vsel %vm674, %v887, 0.0
  %v964 = vadd.f32 %v962, %v963
  %v965 = vsel %vm674, %v888, 0.0
  %v966 = vadd.f32 %v964, %v965
  %v967 = vsel %vm674, %v889, 0.0
  %v968 = vadd.f32 %v966, %v967
  %v969 = vsel %vm674, %v890, 0.0
  %v970 = vadd.f32 %v968, %v969
  %v971 = vsel %vm674, %v891, 0.0
  %v972 = vadd.f32 %v970, %v971
  %v973 = vsel %vm674, %v892, 0.0
  %v974 = vadd.f32 %v972, %v973
  %v975 = vsel %vm674, %v893, 0.0
  %v976 = vadd.f32 %v974, %v975
  %v977 = vsel %vm674, %v894, 0.0
  %v978 = vadd.f32 %v976, %v977
  %v979 = vsel %vm674, %v895, 0.0
  %v980 = vadd.f32 %v978, %v979
  %v981 = vsel %vm674, %v896, 0.0
  %v982 = vadd.f32 %v980, %v981
  %v983 = vsel %vm674, %v897, 0.0
  %v984 = vadd.f32 %v982, %v983
  %v985 = vsel %vm674, %v898, 0.0
  %v986 = vadd.f32 %v984, %v985
  %v987 = vsel %vm674, %v899, 0.0
  %v988 = vadd.f32 %v986, %v987
  %v989 = vsel %vm674, %v900, 0.0
  %v990 = vadd.f32 %v988, %v989
  %v991 = vsel %vm674, %v901, 0.0
  %v992 = vadd.f32 %v990, %v991
  %v993 = vsel %vm674, %v902, 0.0
  %v994 = vadd.f32 %v992, %v993
  %v995 = vsel %vm674, %v903, 0.0
  %v996 = vadd.f32 %v994, %v995
  %v997 = vsel %vm674, %v904, 0.0
  %v998 = vadd.f32 %v996, %v997
  %v999 = vsel %vm674, %v905, 0.0
  %v1000 = vadd.f32 %v998, %v999
  %v1001 = vsel %vm674, %v906, 0.0
  %v1002 = vadd.f32 %v1000, %v1001
  %v1003 = vsel %vm674, %v907, 0.0
  %v1004 = vadd.f32 %v1002, %v1003
  %v1005 = vsel %vm674, %v908, 0.0
  %v1006 = vadd.f32 %v1004, %v1005
  %v1007 = vsel %vm674, %v909, 0.0
  %v1008 = vadd.f32 %v1006, %v1007
  %v1009 = vsel %vm674, %v910, 0.0
  %v1010 = vadd.f32 %v1008, %v1009
  %v1011 = vsel %vm674, %v911, 0.0
  %v1012 = vadd.f32 %v1010, %v1011
  %v1013 = vsel %vm674, %v912, 0.0
  %v1014 = vadd.f32 %v1012, %v1013
  %v1015 = vsel %vm674, %v913, 0.0
  %v1016 = vadd.f32 %v1014, %v1015
  %v1017 = vsel %vm674, %v914, 0.0
  %v1018 = vadd.f32 %v1016, %v1017
  %v1019 = vsel %vm674, %v915, 0.0
  %v1020 = vadd.f32 %v1018, %v1019
  %v1021 = vsel %vm674, %v916, 0.0
  %v1022 = vadd.f32 %v1020, %v1021
  %v1023 = vsel %vm674, %v917, 0.0
  %v1024 = vadd.f32 %v1022, %v1023
  %v1025 = vsel %vm674, %v918, 0.0
  %v1026 = vadd.f32 %v1024, %v1025
  %v1027 = vsel %vm674, %v919, 0.0
  %v1028 = vadd.f32 %v1026, %v1027
  %v1029 = vsel %vm674, %v920, 0.0
  %v1030 = vadd.f32 %v1028, %v1029
  %v1031 = vsel %vm674, %v921, 0.0
  %v1032 = vadd.f32 %v1030, %v1031
  %v1033 = vsel %vm674, %v922, 0.0
  %v1034 = vadd.f32 %v1032, %v1033
  %v1035 = vsel %vm674, %v923, 0.0
  %v1036 = vadd.f32 %v1034, %v1035
  %v1037 = vsel %vm674, %v924, 0.0
  %v1038 = vadd.f32 %v1036, %v1037
  %v1039 = vsel %vm674, %v925, 0.0
  %v1040 = vadd.f32 %v1038, %v1039
  %v1041 = vsel %vm674, %v926, 0.0
  %v1042 = vadd.f32 %v1040, %v1041
  %v1043 = vsel %vm674, %v927, 0.0
  %v1044 = vadd.f32 %v1042, %v1043
  %v1045 = vsel %vm674, %v928, 0.0
  %v1046 = vadd.f32 %v1044, %v1045
  %v1047 = vsel %vm674, %v929, 0.0
  %v1048 = vadd.f32 %v1046, %v1047
  %v1049 = vsel %vm674, %v930, 0.0
  %v1050 = vadd.f32 %v1048, %v1049
  %v1051 = vsel %vm674, %v931, 0.0
  %v1052 = vadd.f32 %v1050, %v1051
  %v1053 = vsel %vm674, %v932, 0.0
  %v1054 = vadd.f32 %v1052, %v1053
  %v1055 = vsel %vm674, %v933, 0.0
  %v1056 = vadd.f32 %v1054, %v1055
  %v1057 = vsel %vm674, %v934, 0.0
  %v1058 = vadd.f32 %v1056, %v1057
  %v1059 = vsel %vm674, %v935, 0.0
  %v1060 = vadd.f32 %v1058, %v1059
  %v1061 = vsel %vm674, %v936, 0.0
  %v1062 = vadd.f32 %v1060, %v1061
  %v1063 = vsel %vm674, %v937, 0.0
  %v1064 = vadd.f32 %v1062, %v1063
  %v1065 = vrot.slane %v1064, 4
  %v1066 = vadd.f32 %v1064, %v1065
  %v1067 = vrot.slane %v1066, 2
  %v1068 = vadd.f32 %v1066, %v1067
  %v1069 = vrot.slane %v1068, 1
  %v1070 = vadd.f32 %v1068, %v1069
  %1071 = vst.msk [vmem:[%s4 + $0x1] sm:$0x1] %vm872, %v1070
  // Predicated region
  $region14: #{conv_block_forward.2} parent=0 // pred_check
    _
  $region15: #{conv_block_forward.2} parent=0 // pred_check_branch
    %1073 = sbr.rel (0) target = $region17
  $region16: #{conv_block_forward.2} parent=0 // pred_region
    _
  $region17: #{conv_block_forward.2} parent=0 // pred_fallthru
    _
  // Predicated region
  $region18: #{conv_block_forward.2} parent=0 // pred_check
    _
  $region19: #{conv_block_forward.2} parent=0 // pred_check_branch
    %1075 = sbr.rel (0) target = $region21
  $region20: #{conv_block_forward.2} parent=0 // pred_region
    _
  $region21: #{conv_block_forward.2} parent=0 // pred_fallthru
    _
  // Predicated region
  $region22: #{conv_block_forward.2} parent=0 // pred_check
    _
  $region23: #{conv_block_forward.2} parent=0 // pred_check_branch
    %1077 = sbr.rel (0) target = $region25
  $region24: #{conv_block_forward.2} parent=0 // pred_region
    _
  $region25: #{conv_block_forward.2} parent=0 // pred_fallthru
    _
  // Predicated region
  $region26: #{conv_block_forward.2} parent=0 // pred_check
    _
  $region27: #{conv_block_forward.2} parent=0 // pred_check_branch
    %1079 = sbr.rel (0) target = $region29
  $region28: #{conv_block_forward.2} parent=0 // pred_region
    _
  $region29: #{conv_block_forward.2} parent=0 // pred_fallthru
    _

</llo_original>
